<compile_context>
chip_gen: v6e
topology: v6e:2x2x1
jax: 0.10.0
libtpu: 0.0.40
codegen_flags: <defaults>
</compile_context>

<pallas_src>
import functools
import math

import numpy as np

import jax
import jax.numpy as jnp
from jax import lax
from jax.experimental import pallas as pl
from jax.experimental.pallas import tpu as pltpu

DEFAULT_TIME_WARP_MODE = "bicubic"
_A = -0.75  # PyTorch bicubic convolution coefficient


# ----------------------------------------------------------------------------
# Bicubic convolution kernel (torch align_corners=False semantics).
# Works on python floats and on jnp arrays.
# ----------------------------------------------------------------------------
def _cubic_conv1(x):
    return ((_A + 2.0) * x - (_A + 3.0)) * x * x + 1.0


def _cubic_conv2(x):
    return ((_A * x - 5.0 * _A) * x + 8.0 * _A) * x - 4.0 * _A


# ----------------------------------------------------------------------------
# Small helpers
# ----------------------------------------------------------------------------
def _round_up(x: int, m: int) -> int:
    return ((x + m - 1) // m) * m


def _choose_t_tiling(t: int, max_tm: int = 512):
    """Pick tm (=tk) and T_pad: prefer big tiles, cap padding waste to ~25%."""
    t_min = _round_up(t, 128)
    for tm in (512, 256, 128):
        if tm > max_tm:
            continue
        t_pad = _round_up(t, tm)
        if t_pad - t_min <= t_min // 4:
            return tm, t_pad
    return 128, t_min


def _choose_n_tiling(n: int, max_tn: int = 2048):
    """Pick tn and N_pad: lane-dense, 256-aligned, padding waste <= ~25%."""
    n_min = _round_up(n, 128)
    if n_min <= max_tn:
        tn = n_min if n_min <= 256 else _round_up(n_min, 256)
        return tn, tn
    for tn in (2048, 1024, 512, 256):
        if tn > max_tn:
            continue
        n_pad = _round_up(n, tn)
        if n_pad - n_min <= max(n_min // 4, 128):
            return tn, n_pad
    return 256, _round_up(n, 256)


def _sample_center_warped(key, t: int, window: int):
    """Traced (center, warped) draws matching the torch.randint ranges."""
    kc, kw = jax.random.split(key)
    # center ~ U[window, t-window-1]
    center = window + jax.random.randint(kc, (), 0, t - 2 * window, dtype=jnp.int32)
    # warped ~ U[center-window+1, center+window]
    warped = center - window + 1 + jax.random.randint(kw, (), 0, 2 * window, dtype=jnp.int32)
    return center, warped


def _tap_index_bounds(t: int, t_pad: int, center, warped):
    """Per output-row min/max input-row index touched by the 4 bicubic taps.

    Mirrors the in-kernel formulas exactly; center/warped are traced int32.
    Returns two (t_pad,) int32 arrays.
    """
    rows = jnp.arange(t_pad, dtype=jnp.int32)
    left = rows < warped
    local = jnp.where(left, rows, rows - warped).astype(jnp.float32)
    in_size = jnp.where(left, center, t - center)
    out_size = jnp.where(left, warped, t - warped)
    in_lo = jnp.where(left, 0, center)
    scale = in_size.astype(jnp.float32) / out_size.astype(jnp.float32)
    src = scale * (local + 0.5) - 0.5          # align_corners=False
    fl = jnp.floor(src).astype(jnp.int32)
    hi = in_size - 1
    lo_idx = jnp.clip(fl - 1, 0, hi) + in_lo
    hi_idx = jnp.clip(fl + 2, 0, hi) + in_lo
    return lo_idx, hi_idx


# ----------------------------------------------------------------------------
# Pallas kernel: band-limited tiled y = W(center, warped) @ x,
# W tiles built on the fly from scalar-prefetched (center, warped).
# ----------------------------------------------------------------------------
def _time_warp_kernel(params_ref, klo_ref, khi_ref, x_ref, o_ref, acc_ref,
                      *, t, tm, tk):
    """Accumulate one (tm, tn) output tile over the in-band k blocks.

    params_ref: SMEM (2,) int32 = [center, warped]     (scalar prefetch)
    klo_ref:    SMEM (num_m,) int32 first in-band k block per m tile
    khi_ref:    SMEM (num_m,) int32 last  in-band k block per m tile
    x_ref:      VMEM (tk, tn)  input slab, time x (batch*freq)
    o_ref:      VMEM (tm, tn)  output tile (x dtype)
    acc_ref:    VMEM (tm, tn)  f32 accumulator scratch
    """
    m = pl.program_id(0)
    k = pl.program_id(2)

    @pl.when(k == 0)
    def _init():
        acc_ref[...] = jnp.zeros_like(acc_ref)

    center = params_ref[0]
    warped = params_ref[1]
    k_lo = klo_ref[m]
    k_hi = khi_ref[m]

    # Out-of-band k steps re-present the clamped resident x block (no DMA,
    # via the clamped index_map) and skip all compute.
    in_band = jnp.logical_and(k >= k_lo, k <= k_hi)

    @pl.when(in_band)
    def _accumulate():
        row0 = m * tm  # first output-time row of this tile
        col0 = k * tk  # first input-time column of this tile (in-band: == block k)

        # ---- rebuild this (tm, tk) tile of the bicubic warp matrix (VPU) ----
        # Kept in f32 (v5e has no bf16 VPU); cast only at the MXU input.
        r = row0 + lax.broadcasted_iota(jnp.int32, (tm, 1), 0)  # output rows
        left = r < warped
        local = jnp.where(left, r, r - warped).astype(jnp.float32)
        in_size = jnp.where(left, center, t - center)            # (tm, 1) int32
        out_size = jnp.where(left, warped, t - warped)
        in_lo = jnp.where(left, 0, center)
        scale = in_size.astype(jnp.float32) / out_size.astype(jnp.float32)

        src = scale * (local + 0.5) - 0.5          # align_corners=False
        fl = jnp.floor(src)
        frac = src - fl
        fl_i = fl.astype(jnp.int32)

        taps = (
            _cubic_conv2(frac + 1.0),
            _cubic_conv1(frac),
            _cubic_conv1(1.0 - frac),
            _cubic_conv2(2.0 - frac),
        )

        cols = col0 + lax.broadcasted_iota(jnp.int32, (tm, tk), 1)
        hi = in_size - 1
        w_tile = jnp.zeros((tm, tk), jnp.float32)
        for tap, w in enumerate(taps):
            idx = jnp.clip(fl_i - 1 + tap, 0, hi) + in_lo        # border clamp
            w_tile = w_tile + jnp.where(cols == idx, w, 0.0)     # duplicates add

        acc_ref[...] += jnp.dot(
            w_tile.astype(x_ref.dtype), x_ref[...],
            preferred_element_type=jnp.float32)

    @pl.when(k == pl.num_programs(2) - 1)
    def _finalize():
        o_ref[...] = acc_ref[...].astype(o_ref.dtype)


def _apply_time_warp(x, center, warped, *, compute_dtype=jnp.bfloat16):
    """x: (B, T, F); center/warped: traced int32 scalars. Returns warped x."""
    B, T, F = x.shape
    N = B * F
    out_dtype = x.dtype

    tm, T_pad = _choose_t_tiling(T)
    tk = tm
    tn, N_pad = _choose_n_tiling(N)
    num_m = T_pad // tm
    num_k = T_pad // tk
    num_n = N_pad // tn

    # (B, T, F) -> (T, B*F): time on the contraction axis, batch*freq folded
    # onto lanes (lane-dense output stores, full MXU N width).
    xs = jnp.transpose(x, (1, 0, 2)).reshape(T, N).astype(compute_dtype)
    xs = jnp.pad(xs, ((0, T_pad - T), (0, N_pad - N)))

    params = jnp.stack([center, warped]).astype(jnp.int32)

    # Per-m-tile k-block band actually touched by the 4 taps (traced, tiny).
    lo_idx, hi_idx = _tap_index_bounds(T, T_pad, center, warped)
    k_lo = (lo_idx.reshape(num_m, tm).min(axis=1) // tk).astype(jnp.int32)
    k_hi = (hi_idx.reshape(num_m, tm).max(axis=1) // tk).astype(jnp.int32)

    grid = (num_m, num_n, num_k)
    kernel = functools.partial(_time_warp_kernel, t=T, tm=tm, tk=tk)

    y = pl.pallas_call(
        kernel,
        out_shape=jax.ShapeDtypeStruct((T_pad, N_pad), out_dtype),
        grid_spec=pltpu.PrefetchScalarGridSpec(
            num_scalar_prefetch=3,
            grid=grid,
            in_specs=[
                pl.BlockSpec(
                    (tk, tn),
                    # Clamp k into the per-m band: out-of-band steps keep the
                    # same block index as the band edge -> no redundant DMA.
                    lambda m, n, k, p, klo, khi: (
                        jnp.minimum(jnp.maximum(k, klo[m]), khi[m]), n)),
            ],
            out_specs=pl.BlockSpec((tm, tn), lambda m, n, k, p, klo, khi: (m, n)),
            scratch_shapes=[pltpu.VMEM((tm, tn), jnp.float32)],
        ),
        compiler_params=pltpu.CompilerParams(
            dimension_semantics=("parallel", "parallel", "arbitrary"),
            vmem_limit_bytes=40 * 1024 * 1024,
        ),
    )(params, k_lo, k_hi, xs)

    return y[:T, :N].reshape(T, B, F).transpose(1, 0, 2)


# ----------------------------------------------------------------------------
# Module-level API mirroring espnet2 TimeWarp (fully jit-traceable).
# ----------------------------------------------------------------------------
def time_warp(x, key, window: int = 80, mode: str = DEFAULT_TIME_WARP_MODE,
              compute_dtype=jnp.bfloat16):
    """Time warping. x: (Batch, Time, Freq)."""
    assert mode == "bicubic", "only bicubic mode implemented"
    assert x.ndim == 3, "expected (Batch, Time, Freq)"
    _, t, _ = x.shape
    if t - window <= window:
        return x
    center, warped = _sample_center_warped(key, t, window)
    return _apply_time_warp(x, center, warped, compute_dtype=compute_dtype)


class TimeWarp:
    """JAX/Pallas port of espnet2.layers.time_warp.TimeWarp."""

    def __init__(self, window: int = 80, mode: str = DEFAULT_TIME_WARP_MODE,
                 compute_dtype=jnp.bfloat16):
        self.window = window
        self.mode = mode
        self.compute_dtype = compute_dtype

    def __call__(self, x, x_lengths=None, key=None):
        if key is None:
            key = jax.random.PRNGKey(0)
        if x_lengths is not None and isinstance(x_lengths, (np.ndarray, list, tuple)):
            lens = np.asarray(x_lengths)
            if lens.size and not np.all(lens == lens.flat[0]):
                # TODO(synk): per-sample variable-length (ragged) warping has no
                # static-shape Pallas equivalent; only equal-length batches.
                raise NotImplementedError("variable x_lengths not supported")
        y = time_warp(x, key, window=self.window, mode=self.mode,
                      compute_dtype=self.compute_dtype)
        return y, x_lengths


# ----------------------------------------------------------------------------
# Host reference (demo/verification only): dense W with torch bicubic weights.
# ----------------------------------------------------------------------------
def _interp_matrix_np(out_size: int, in_size: int) -> np.ndarray:
    M = np.zeros((out_size, in_size), dtype=np.float32)
    scale = in_size / out_size
    for i in range(out_size):
        src = scale * (i + 0.5) - 0.5
        fl = int(math.floor(src))
        frac = src - fl
        ws = (_cubic_conv2(frac + 1.0), _cubic_conv1(frac),
              _cubic_conv1(1.0 - frac), _cubic_conv2(2.0 - frac))
        for k in range(4):
            idx = min(max(fl - 1 + k, 0), in_size - 1)
            M[i, idx] += ws[k]
    return M


def _build_warp_matrix_np(t: int, center: int, warped: int) -> np.ndarray:
    W = np.zeros((t, t), dtype=np.float32)
    W[:warped, :center] = _interp_matrix_np(warped, center)
    W[warped:, center:] = _interp_matrix_np(t - warped, t - center)
    return W


# ----------------------------------------------------------------------------
# Demo / correctness check
# ----------------------------------------------------------------------------
if __name__ == "__main__":
    def _check(B, T, F, window, key, compute_dtype, tol):
        kx, kwarp = jax.random.split(key)
        x = jax.random.normal(kx, (B, T, F), dtype=jnp.float32)

        warp_fn = jax.jit(functools.partial(
            time_warp, window=window, compute_dtype=compute_dtype))
        y = jax.block_until_ready(warp_fn(x, kwarp))
        assert y.shape == (B, T, F) and y.dtype == x.dtype

        # Reference with the same (center, warped) draw (f32 numpy einsum).
        center, warped = _sample_center_warped(kwarp, T, window)
        center, warped = int(center), int(warped)
        W_ref = _build_warp_matrix_np(T, center, warped)
        y_ref = np.einsum("ti,bif->btf", W_ref, np.asarray(x, dtype=np.float32))
        np.testing.assert_allclose(
            np.asarray(y, dtype=np.float32), y_ref, atol=tol, rtol=tol)

    key = jax.random.PRNGKey(0)
    k1, k2 = jax.random.split(key)
    # small, single-tile path, f32 compute (tight tolerance)
    _check(2, 16, 16, 3, k1, jnp.float32, 2e-3)
    # multi-tile: band-limited K accumulation + data-dependent x index_map
    _check(2, 520, 24, 80, k2, jnp.bfloat16, 5e-2)

    # Class-level smoke test (mirrors the torch module interface).
    x = jax.random.normal(jax.random.PRNGKey(1), (2, 16, 16), dtype=jnp.float32)
    y_cls, lens = TimeWarp(window=3)(x, None, key=jax.random.PRNGKey(2))
    jax.block_until_ready(y_cls)
    assert y_cls.shape == x.shape and lens is None

    print("KERNEL_OK")
</pallas_src>

<mosaic_0001>
module attributes {stable_mosaic.version = 11 : i64} {
  func.func @_time_warp_kernel(%arg0: i32, %arg1: i32, %arg2: i32, %arg3: memref<2xi32, #tpu.memory_space<smem>>, %arg4: memref<1xi32, #tpu.memory_space<smem>>, %arg5: memref<1xi32, #tpu.memory_space<smem>>, %arg6: memref<128x128xf32, #tpu.memory_space<vmem>>, %arg7: memref<128x128xf32, #tpu.memory_space<vmem>>, %arg8: memref<128x128xf32, #tpu.memory_space<vmem>>) attributes {dimension_semantics = [#tpu.dimension_semantics<parallel>, #tpu.dimension_semantics<parallel>, #tpu.dimension_semantics<arbitrary>], iteration_bounds = array<i64: 1, 1, 1>, scalar_prefetch = 3 : i64, scratch_operands = 1 : i64, tpu.core_type = #tpu.core_type<tc>, window_params = [{transform_indices = @transform_0, window_bounds = array<i64: 128, 128>}, {transform_indices = @transform_1, window_bounds = array<i64: 128, 128>}]} {
    %c0_i32 = arith.constant 0 : i32
    %0 = arith.cmpi eq, %arg2, %c0_i32 : i32
    %1 = arith.extui %0 : i1 to i32
    %c0_i32_0 = arith.constant 0 : i32
    %2 = arith.cmpi ne, %1, %c0_i32_0 : i32
    scf.if %2 {
      %cst = arith.constant 0.000000e+00 : f32
      %17 = vector.broadcast %cst : f32 to vector<128x128xf32>
      %c0_4 = arith.constant 0 : index
      %c0_5 = arith.constant 0 : index
      %18 = vector.load %arg8[%c0_4, %c0_5] : memref<128x128xf32, #tpu.memory_space<vmem>>, vector<128x128xf32>
      tpu.vector_store %arg8[%c0_4, %c0_5], %17 {strides = array<i32>} : memref<128x128xf32, #tpu.memory_space<vmem>>, vector<128x128xf32>,
    } else {
    }
    %c0 = arith.constant 0 : index
    %3 = memref.load %arg3[%c0] : memref<2xi32, #tpu.memory_space<smem>>
    %c1 = arith.constant 1 : index
    %4 = memref.load %arg3[%c1] : memref<2xi32, #tpu.memory_space<smem>>
    %5 = arith.index_cast %arg0 : i32 to index
    %6 = memref.load %arg4[%5] : memref<1xi32, #tpu.memory_space<smem>>
    %7 = arith.index_cast %arg0 : i32 to index
    %8 = memref.load %arg5[%7] : memref<1xi32, #tpu.memory_space<smem>>
    %9 = arith.cmpi sge, %arg2, %6 : i32
    %10 = arith.cmpi sle, %arg2, %8 : i32
    %11 = arith.andi %9, %10 : i1
    %12 = arith.extui %11 : i1 to i32
    %c0_i32_1 = arith.constant 0 : i32
    %13 = arith.cmpi ne, %12, %c0_i32_1 : i32
    scf.if %13 {
      %c128_i32 = arith.constant 128 : i32
      %17 = arith.muli %arg0, %c128_i32 : i32
      %c128_i32_4 = arith.constant 128 : i32
      %18 = arith.muli %arg2, %c128_i32_4 : i32
      %19 = tpu.iota {dimensions = array<i32: 0>} : vector<128x1xi32>
      %20 = vector.broadcast %17 : i32 to vector<128x1xi32>
      %21 = arith.addi %20, %19 : vector<128x1xi32>
      %22 = vector.broadcast %4 : i32 to vector<128x1xi32>
      %23 = arith.cmpi slt, %21, %22 : vector<128x1xi32>
      %24 = vector.broadcast %4 : i32 to vector<128x1xi32>
      %25 = arith.subi %21, %24 : vector<128x1xi32>
      %26 = arith.select %23, %21, %25 : vector<128x1xi1>, vector<128x1xi32>
      %27 = arith.sitofp %26 : vector<128x1xi32> to vector<128x1xf32>
      %c16_i32 = arith.constant 16 : i32
      %28 = arith.subi %c16_i32, %3 : i32
      %29 = vector.broadcast %3 : i32 to vector<128x1xi32>
      %30 = vector.broadcast %28 : i32 to vector<128x1xi32>
      %31 = arith.select %23, %29, %30 : vector<128x1xi1>, vector<128x1xi32>
      %c16_i32_5 = arith.constant 16 : i32
      %32 = arith.subi %c16_i32_5, %4 : i32
      %33 = vector.broadcast %4 : i32 to vector<128x1xi32>
      %34 = vector.broadcast %32 : i32 to vector<128x1xi32>
      %35 = arith.select %23, %33, %34 : vector<128x1xi1>, vector<128x1xi32>
      %c0_i32_6 = arith.constant 0 : i32
      %36 = vector.broadcast %c0_i32_6 : i32 to vector<128x1xi32>
      %37 = vector.broadcast %3 : i32 to vector<128x1xi32>
      %38 = arith.select %23, %36, %37 : vector<128x1xi1>, vector<128x1xi32>
      %39 = arith.sitofp %31 : vector<128x1xi32> to vector<128x1xf32>
      %40 = arith.sitofp %35 : vector<128x1xi32> to vector<128x1xf32>
      %41 = arith.divf %39, %40 : vector<128x1xf32>
      %cst = arith.constant 5.000000e-01 : f32
      %42 = vector.broadcast %cst : f32 to vector<128x1xf32>
      %43 = arith.addf %27, %42 : vector<128x1xf32>
      %44 = arith.mulf %41, %43 : vector<128x1xf32>
      %cst_7 = arith.constant 5.000000e-01 : f32
      %45 = vector.broadcast %cst_7 : f32 to vector<128x1xf32>
      %46 = arith.subf %44, %45 : vector<128x1xf32>
      %47 = math.floor %46 : vector<128x1xf32>
      %48 = arith.subf %46, %47 : vector<128x1xf32>
      %49 = arith.fptosi %47 : vector<128x1xf32> to vector<128x1xi32>
      %cst_8 = arith.constant 1.000000e+00 : f32
      %50 = vector.broadcast %cst_8 : f32 to vector<128x1xf32>
      %51 = arith.addf %48, %50 : vector<128x1xf32>
      %cst_9 = arith.constant -7.500000e-01 : f32
      %52 = vector.broadcast %cst_9 : f32 to vector<128x1xf32>
      %53 = arith.mulf %52, %51 : vector<128x1xf32>
      %cst_10 = arith.constant -3.750000e+00 : f32
      %54 = vector.broadcast %cst_10 : f32 to vector<128x1xf32>
      %55 = arith.subf %53, %54 : vector<128x1xf32>
      %56 = arith.mulf %55, %51 : vector<128x1xf32>
      %cst_11 = arith.constant -6.000000e+00 : f32
      %57 = vector.broadcast %cst_11 : f32 to vector<128x1xf32>
      %58 = arith.addf %56, %57 : vector<128x1xf32>
      %59 = arith.mulf %58, %51 : vector<128x1xf32>
      %cst_12 = arith.constant -3.000000e+00 : f32
      %60 = vector.broadcast %cst_12 : f32 to vector<128x1xf32>
      %61 = arith.subf %59, %60 : vector<128x1xf32>
      %cst_13 = arith.constant 1.250000e+00 : f32
      %62 = vector.broadcast %cst_13 : f32 to vector<128x1xf32>
      %63 = arith.mulf %62, %48 : vector<128x1xf32>
      %cst_14 = arith.constant 2.250000e+00 : f32
      %64 = vector.broadcast %cst_14 : f32 to vector<128x1xf32>
      %65 = arith.subf %63, %64 : vector<128x1xf32>
      %66 = arith.mulf %65, %48 : vector<128x1xf32>
      %67 = arith.mulf %66, %48 : vector<128x1xf32>
      %cst_15 = arith.constant 1.000000e+00 : f32
      %68 = vector.broadcast %cst_15 : f32 to vector<128x1xf32>
      %69 = arith.addf %67, %68 : vector<128x1xf32>
      %cst_16 = arith.constant 1.000000e+00 : f32
      %70 = vector.broadcast %cst_16 : f32 to vector<128x1xf32>
      %71 = arith.subf %70, %48 : vector<128x1xf32>
      %cst_17 = arith.constant 1.250000e+00 : f32
      %72 = vector.broadcast %cst_17 : f32 to vector<128x1xf32>
      %73 = arith.mulf %72, %71 : vector<128x1xf32>
      %cst_18 = arith.constant 2.250000e+00 : f32
      %74 = vector.broadcast %cst_18 : f32 to vector<128x1xf32>
      %75 = arith.subf %73, %74 : vector<128x1xf32>
      %76 = arith.mulf %75, %71 : vector<128x1xf32>
      %77 = arith.mulf %76, %71 : vector<128x1xf32>
      %cst_19 = arith.constant 1.000000e+00 : f32
      %78 = vector.broadcast %cst_19 : f32 to vector<128x1xf32>
      %79 = arith.addf %77, %78 : vector<128x1xf32>
      %cst_20 = arith.constant 2.000000e+00 : f32
      %80 = vector.broadcast %cst_20 : f32 to vector<128x1xf32>
      %81 = arith.subf %80, %48 : vector<128x1xf32>
      %cst_21 = arith.constant -7.500000e-01 : f32
      %82 = vector.broadcast %cst_21 : f32 to vector<128x1xf32>
      %83 = arith.mulf %82, %81 : vector<128x1xf32>
      %cst_22 = arith.constant -3.750000e+00 : f32
      %84 = vector.broadcast %cst_22 : f32 to vector<128x1xf32>
      %85 = arith.subf %83, %84 : vector<128x1xf32>
      %86 = arith.mulf %85, %81 : vector<128x1xf32>
      %cst_23 = arith.constant -6.000000e+00 : f32
      %87 = vector.broadcast %cst_23 : f32 to vector<128x1xf32>
      %88 = arith.addf %86, %87 : vector<128x1xf32>
      %89 = arith.mulf %88, %81 : vector<128x1xf32>
      %cst_24 = arith.constant -3.000000e+00 : f32
      %90 = vector.broadcast %cst_24 : f32 to vector<128x1xf32>
      %91 = arith.subf %89, %90 : vector<128x1xf32>
      %92 = tpu.iota {dimensions = array<i32: 1>} : vector<128x128xi32>
      %93 = vector.broadcast %18 : i32 to vector<128x128xi32>
      %94 = arith.addi %93, %92 : vector<128x128xi32>
      %c1_i32 = arith.constant 1 : i32
      %95 = vector.broadcast %c1_i32 : i32 to vector<128x1xi32>
      %96 = arith.subi %31, %95 : vector<128x1xi32>
      %cst_25 = arith.constant 0.000000e+00 : f32
      %97 = vector.broadcast %cst_25 : f32 to vector<128x128xf32>
      %c1_i32_26 = arith.constant 1 : i32
      %98 = vector.broadcast %c1_i32_26 : i32 to vector<128x1xi32>
      %99 = arith.subi %49, %98 : vector<128x1xi32>
      %c0_i32_27 = arith.constant 0 : i32
      %100 = vector.broadcast %c0_i32_27 : i32 to vector<128x1xi32>
      %101 = arith.addi %99, %100 : vector<128x1xi32>
      %c0_i32_28 = arith.constant 0 : i32
      %102 = vector.broadcast %c0_i32_28 : i32 to vector<128x1xi32>
      %103 = arith.maxsi %102, %101 : vector<128x1xi32>
      %104 = arith.minsi %96, %103 : vector<128x1xi32>
      %105 = arith.addi %104, %38 : vector<128x1xi32>
      %106 = vector.broadcast %105 : vector<128x1xi32> to vector<128x128xi32>
      %107 = arith.cmpi eq, %94, %106 : vector<128x128xi32>
      %cst_29 = arith.constant 0.000000e+00 : f32
      %108 = vector.shape_cast %61 : vector<128x1xf32> to vector<128x1xf32>
      %109 = vector.broadcast %108 : vector<128x1xf32> to vector<128x128xf32>
      %110 = vector.broadcast %cst_29 : f32 to vector<128x128xf32>
      %111 = arith.select %107, %109, %110 : vector<128x128xi1>, vector<128x128xf32>
      %112 = arith.addf %97, %111 : vector<128x128xf32>
      %c1_i32_30 = arith.constant 1 : i32
      %113 = vector.broadcast %c1_i32_30 : i32 to vector<128x1xi32>
      %114 = arith.subi %49, %113 : vector<128x1xi32>
      %c1_i32_31 = arith.constant 1 : i32
      %115 = vector.broadcast %c1_i32_31 : i32 to vector<128x1xi32>
      %116 = arith.addi %114, %115 : vector<128x1xi32>
      %c0_i32_32 = arith.constant 0 : i32
      %117 = vector.broadcast %c0_i32_32 : i32 to vector<128x1xi32>
      %118 = arith.maxsi %117, %116 : vector<128x1xi32>
      %119 = arith.minsi %96, %118 : vector<128x1xi32>
      %120 = arith.addi %119, %38 : vector<128x1xi32>
      %121 = vector.broadcast %120 : vector<128x1xi32> to vector<128x128xi32>
      %122 = arith.cmpi eq, %94, %121 : vector<128x128xi32>
      %cst_33 = arith.constant 0.000000e+00 : f32
      %123 = vector.shape_cast %69 : vector<128x1xf32> to vector<128x1xf32>
      %124 = vector.broadcast %123 : vector<128x1xf32> to vector<128x128xf32>
      %125 = vector.broadcast %cst_33 : f32 to vector<128x128xf32>
      %126 = arith.select %122, %124, %125 : vector<128x128xi1>, vector<128x128xf32>
      %127 = arith.addf %112, %126 : vector<128x128xf32>
      %c1_i32_34 = arith.constant 1 : i32
      %128 = vector.broadcast %c1_i32_34 : i32 to vector<128x1xi32>
      %129 = arith.subi %49, %128 : vector<128x1xi32>
      %c2_i32 = arith.constant 2 : i32
      %130 = vector.broadcast %c2_i32 : i32 to vector<128x1xi32>
      %131 = arith.addi %129, %130 : vector<128x1xi32>
      %c0_i32_35 = arith.constant 0 : i32
      %132 = vector.broadcast %c0_i32_35 : i32 to vector<128x1xi32>
      %133 = arith.maxsi %132, %131 : vector<128x1xi32>
      %134 = arith.minsi %96, %133 : vector<128x1xi32>
      %135 = arith.addi %134, %38 : vector<128x1xi32>
      %136 = vector.broadcast %135 : vector<128x1xi32> to vector<128x128xi32>
      %137 = arith.cmpi eq, %94, %136 : vector<128x128xi32>
      %cst_36 = arith.constant 0.000000e+00 : f32
      %138 = vector.shape_cast %79 : vector<128x1xf32> to vector<128x1xf32>
      %139 = vector.broadcast %138 : vector<128x1xf32> to vector<128x128xf32>
      %140 = vector.broadcast %cst_36 : f32 to vector<128x128xf32>
      %141 = arith.select %137, %139, %140 : vector<128x128xi1>, vector<128x128xf32>
      %142 = arith.addf %127, %141 : vector<128x128xf32>
      %c1_i32_37 = arith.constant 1 : i32
      %143 = vector.broadcast %c1_i32_37 : i32 to vector<128x1xi32>
      %144 = arith.subi %49, %143 : vector<128x1xi32>
      %c3_i32 = arith.constant 3 : i32
      %145 = vector.broadcast %c3_i32 : i32 to vector<128x1xi32>
      %146 = arith.addi %144, %145 : vector<128x1xi32>
      %c0_i32_38 = arith.constant 0 : i32
      %147 = vector.broadcast %c0_i32_38 : i32 to vector<128x1xi32>
      %148 = arith.maxsi %147, %146 : vector<128x1xi32>
      %149 = arith.minsi %96, %148 : vector<128x1xi32>
      %150 = arith.addi %149, %38 : vector<128x1xi32>
      %151 = vector.broadcast %150 : vector<128x1xi32> to vector<128x128xi32>
      %152 = arith.cmpi eq, %94, %151 : vector<128x128xi32>
      %cst_39 = arith.constant 0.000000e+00 : f32
      %153 = vector.shape_cast %91 : vector<128x1xf32> to vector<128x1xf32>
      %154 = vector.broadcast %153 : vector<128x1xf32> to vector<128x128xf32>
      %155 = vector.broadcast %cst_39 : f32 to vector<128x128xf32>
      %156 = arith.select %152, %154, %155 : vector<128x128xi1>, vector<128x128xf32>
      %157 = arith.addf %142, %156 : vector<128x128xf32>
      %c0_40 = arith.constant 0 : index
      %c0_41 = arith.constant 0 : index
      %158 = vector.load %arg8[%c0_40, %c0_41] : memref<128x128xf32, #tpu.memory_space<vmem>>, vector<128x128xf32>
      %c0_42 = arith.constant 0 : index
      %c0_43 = arith.constant 0 : index
      %159 = vector.load %arg6[%c0_42, %c0_43] : memref<128x128xf32, #tpu.memory_space<vmem>>, vector<128x128xf32>
      %cst_44 = arith.constant dense<0.000000e+00> : vector<128x128xf32>
      %160 = tpu.matmul %157, %159, %cst_44 {dimension_numbers = #tpu.dot_dimension_numbers<[1], [0], [0], [1], [0, 0, 1, 1], [], []>} : vector<128x128xf32>, vector<128x128xf32>, vector<128x128xf32> -> vector<128x128xf32>
      %161 = arith.addf %158, %160 : vector<128x128xf32>
      %c0_45 = arith.constant 0 : index
      %c0_46 = arith.constant 0 : index
      %162 = vector.load %arg8[%c0_45, %c0_46] : memref<128x128xf32, #tpu.memory_space<vmem>>, vector<128x128xf32>
      tpu.vector_store %arg8[%c0_45, %c0_46], %161 {strides = array<i32>} : memref<128x128xf32, #tpu.memory_space<vmem>>, vector<128x128xf32>,
    } else {
    }
    %c0_i32_2 = arith.constant 0 : i32
    %14 = arith.cmpi eq, %arg2, %c0_i32_2 : i32
    %15 = arith.extui %14 : i1 to i32
    %c0_i32_3 = arith.constant 0 : i32
    %16 = arith.cmpi ne, %15, %c0_i32_3 : i32
    scf.if %16 {
      %c0_4 = arith.constant 0 : index
      %c0_5 = arith.constant 0 : index
      %17 = vector.load %arg8[%c0_4, %c0_5] : memref<128x128xf32, #tpu.memory_space<vmem>>, vector<128x128xf32>
      %c0_6 = arith.constant 0 : index
      %c0_7 = arith.constant 0 : index
      %18 = vector.load %arg7[%c0_6, %c0_7] : memref<128x128xf32, #tpu.memory_space<vmem>>, vector<128x128xf32>
      tpu.vector_store %arg7[%c0_6, %c0_7], %17 {strides = array<i32>} : memref<128x128xf32, #tpu.memory_space<vmem>>, vector<128x128xf32>,
    } else {
    }
    return
  }
  func.func @transform_0(%arg0: i32, %arg1: i32, %arg2: i32, %arg3: memref<2xi32, #tpu.memory_space<smem>>, %arg4: memref<1xi32, #tpu.memory_space<smem>>, %arg5: memref<1xi32, #tpu.memory_space<smem>>) -> (i32, i32) {
    %0 = arith.index_cast %arg0 : i32 to index
    %1 = memref.load %arg4[%0] : memref<1xi32, #tpu.memory_space<smem>>
    %2 = arith.maxsi %arg2, %1 : i32
    %3 = arith.index_cast %arg0 : i32 to index
    %4 = memref.load %arg5[%3] : memref<1xi32, #tpu.memory_space<smem>>
    %5 = arith.minsi %2, %4 : i32
    %c0_i32 = arith.constant 0 : i32
    return %5, %arg1 : i32, i32
  }
  func.func @transform_1(%arg0: i32, %arg1: i32, %arg2: i32, %arg3: memref<2xi32, #tpu.memory_space<smem>>, %arg4: memref<1xi32, #tpu.memory_space<smem>>, %arg5: memref<1xi32, #tpu.memory_space<smem>>) -> (i32, i32) {
    %c0_i32 = arith.constant 0 : i32
    return %arg0, %arg1 : i32, i32
  }
}

</mosaic_0001>

<llo_original>
// kernel: time_warp.1
$region0: #{time_warp.1}
  #allocation0 [shape = 'u32[]', space=smem, size = 0x4, offset = 0x4, fixed_abs, tag = 'smem constant byte address 0x4 - core index']
  #allocation1 [shape = 'u32[144,128]{1,0:T(1,128)}', space=vmem, size = 0x12000, scoped, tag = 'internal scratch']
  #allocation2 [shape = 'f32[128,128]{1,0:T(8,128)}', space=vmem, size = 0x10000, scoped, tag = 'scratch operand']
  #allocation3 [shape = 's32[1]{0}', space=sflag, size = 0x4, scoped, tag = 'scoped memory for time_warp.1']
  #allocation4 [shape = 'u8[512]{0}', space=smem, size = 0x200, scoped, tag = 'prefetched SMEM operand 0']
  #allocation5 [shape = 's32[1]{0:T(128)S(6)}', space=smem, size = 0x200, scoped, tag = 'prefetched SMEM operand 1']
  #allocation6 [shape = 's32[1]{0:T(128)S(6)}', space=smem, size = 0x200, scoped, tag = 'prefetched SMEM operand 2']
  %s0 = inlined_call_operand.vmem [shape: s32[2], index: 0, kind: input, shape index: {}]
  %s1 = inlined_call_operand.<no memory space> [shape: s32[1], index: 1, kind: input, shape index: {}]
  %s2 = inlined_call_operand.<no memory space> [shape: s32[1], index: 2, kind: input, shape index: {}]
  %s3 = inlined_call_operand.vmem [shape: f32[128,128], index: 3, kind: input, shape index: {}]
  %s4 = inlined_call_operand.vmem [shape: f32[128,128], index: 4, kind: output, shape index: {}]
  %s5 = sld [smem:[#allocation0]]
  $region26: #{time_warp.1} parent=0
    _
  %s7 = ssub.s32 1, %s5
  %s8 = scalar_select 0, %s7, %s5
  %s9 = sshll.u32 %s0, 4
  %s10 = int_to_ptr.vmem [resolvable:$true] %s9
  %12 = dma.vmem_to_smem %s10, 16, [#allocation4], [#allocation3]
  %13 = sst [smem:[#allocation5]] %s1
  %14 = sst [smem:[#allocation6]] %s2
  %15 = dma.done [#allocation3], 16
  %16 = sfence
  // Predicated region
  $region2: #{time_warp.1} parent=0 // pred_check
    _
  $region3: #{time_warp.1} parent=0 // pred_check_branch
    %18 = sbr.rel (0) target = $region5
  $region4: #{time_warp.1} parent=0 // pred_region
    %s19 = sld [smem:[#allocation5]]
    %p20 = scmp.gt.s32.totalorder 0, %s19
    %s21 = scalar_select %p20, 0, %s19
    %s22 = sld [smem:[#allocation6]]
    %p23 = scmp.lt.s32.totalorder %s21, %s22
    %s24 = scalar_select %p23, %s21, %s22
    %s25 = smul.u32 16, %s24
    %p26 = scmp.lt.s32.totalorder %s25, 15
    %s27 = scalar_select %p26, %s25, 15
    %s28 = smul.addr %s27, 8
    %s29 = scalar_lea.vmem %s3, %s28
    %s30 = sld [smem:[#allocation5]]
    %p31 = scmp.gt.s32.totalorder 0, %s30
    %s32 = scalar_select %p31, 0, %s30
    %s33 = sld [smem:[#allocation6]]
    %p34 = scmp.lt.s32.totalorder %s32, %s33
    %s35 = scalar_select %p34, %s32, %s33
    %s36 = smul.u32 16, %s35
  $region5: #{time_warp.1} parent=0 // pred_fallthru
    _
  %s37 = sld [smem:[#allocation5]]
  %p38 = scmp.gt.s32.totalorder 0, %s37
  %s39 = scalar_select %p38, 0, %s37
  %s40 = sld [smem:[#allocation6]]
  %p41 = scmp.lt.s32.totalorder %s39, %s40
  %s42 = scalar_select %p41, %s39, %s40
  %s43 = smul.u32 16, %s42
  %p44 = scmp.lt.s32.totalorder %s43, 15
  %s45 = scalar_select %p44, %s43, 15
  %s46 = smul.addr %s45, 8
  %s47 = scalar_lea.vmem %s3, %s46
  %s48 = sld [smem:[#allocation5]]
  %p49 = scmp.gt.s32.totalorder 0, %s48
  %s50 = scalar_select %p49, 0, %s48
  %s51 = sld [smem:[#allocation6]]
  %p52 = scmp.lt.s32.totalorder %s50, %s51
  %s53 = scalar_select %p52, %s50, %s51
  %s54 = smul.u32 16, %s53
  %p55 = scmp.lt.s32.totalorder %s54, 15
  %s56 = scalar_select %p55, %s54, 15
  %s57 = smul.addr %s56, 8
  %s58 = scalar_lea.vmem %s3, %s57
  %s59 = sld [smem:[#allocation5]]
  %p60 = scmp.gt.s32.totalorder 0, %s59
  %s61 = scalar_select %p60, 0, %s59
  %s62 = sld [smem:[#allocation6]]
  %p63 = scmp.lt.s32.totalorder %s61, %s62
  %s64 = scalar_select %p63, %s61, %s62
  %s65 = smul.u32 16, %s64
  %p66 = scmp.eq.s32.totalorder 0, 0
  // Predicated region
  $region6: #{time_warp.1} parent=0 // pred_check
    %p67 = pneg %p66
  $region7: #{time_warp.1} parent=0 // pred_check_branch
    %69 = sbr.rel (%p67) target = $region9
  $region8: #{time_warp.1} parent=0 // pred_region
    %70 = vst [vmem:[#allocation2] sm:$0xff] 0.0
    %71 = vst [vmem:[#allocation2 + $0x8] sm:$0xff] 0.0
    %72 = vst [vmem:[#allocation2 + $0x10] sm:$0xff] 0.0
    %73 = vst [vmem:[#allocation2 + $0x18] sm:$0xff] 0.0
    %74 = vst [vmem:[#allocation2 + $0x20] sm:$0xff] 0.0
    %75 = vst [vmem:[#allocation2 + $0x28] sm:$0xff] 0.0
    %76 = vst [vmem:[#allocation2 + $0x30] sm:$0xff] 0.0
    %77 = vst [vmem:[#allocation2 + $0x38] sm:$0xff] 0.0
    %78 = vst [vmem:[#allocation2 + $0x40] sm:$0xff] 0.0
    %79 = vst [vmem:[#allocation2 + $0x48] sm:$0xff] 0.0
    %80 = vst [vmem:[#allocation2 + $0x50] sm:$0xff] 0.0
    %81 = vst [vmem:[#allocation2 + $0x58] sm:$0xff] 0.0
    %82 = vst [vmem:[#allocation2 + $0x60] sm:$0xff] 0.0
    %83 = vst [vmem:[#allocation2 + $0x68] sm:$0xff] 0.0
    %84 = vst [vmem:[#allocation2 + $0x70] sm:$0xff] 0.0
    %85 = vst [vmem:[#allocation2 + $0x78] sm:$0xff] 0.0
  $region9: #{time_warp.1} parent=0 // pred_fallthru
    _
  %s86 = sld [smem:[#allocation4]]
  %s87 = sld [smem:[#allocation4 + $0x1]]
  %s88 = sld [smem:[#allocation5]]
  %s89 = sld [smem:[#allocation6]]
  %p90 = scmp.ge.s32.totalorder 0, %s88
  %p91 = scmp.le.s32.totalorder 0, %s89
  %p92 = pnand %p90, %p91
  %p93 = pneg %p92
  // Predicated region
  $region10: #{time_warp.1} parent=0 // pred_check
    _
  $region11: #{time_warp.1} parent=0 // pred_check_branch
    %95 = sbr.rel (%p92) target = $region13
  $region12: #{time_warp.1} parent=0 // pred_region
    %s96 = smul.u32 0, 128
    %s97 = smul.u32 0, 128
    %v98 = vlaneseq
    %v99 = vshrl.u32 %v98, 7
    %v100 = vadd.s32 %v99, 8
    %v101 = vadd.s32 %v99, 16
    %v102 = vadd.s32 %v99, 24
    %v103 = vadd.s32 %v99, 32
    %v104 = vadd.s32 %v99, 40
    %v105 = vadd.s32 %v99, 48
    %v106 = vadd.s32 %v99, 56
    %v107 = vadd.s32 %v99, 64
    %v108 = vadd.s32 %v99, 72
    %v109 = vadd.s32 %v99, 80
    %v110 = vadd.s32 %v99, 88
    %v111 = vadd.s32 %v99, 96
    %v112 = vadd.s32 %v99, 104
    %v113 = vadd.s32 %v99, 112
    %v114 = vadd.s32 %v99, 120
    %v115 = vstv %s96
    %v116 = vadd.s32 %v115, %v99
    %v117 = vadd.s32 %v115, %v100
    %v118 = vadd.s32 %v115, %v101
    %v119 = vadd.s32 %v115, %v102
    %v120 = vadd.s32 %v115, %v103
    %v121 = vadd.s32 %v115, %v104
    %v122 = vadd.s32 %v115, %v105
    %v123 = vadd.s32 %v115, %v106
    %v124 = vadd.s32 %v115, %v107
    %v125 = vadd.s32 %v115, %v108
    %v126 = vadd.s32 %v115, %v109
    %v127 = vadd.s32 %v115, %v110
    %v128 = vadd.s32 %v115, %v111
    %v129 = vadd.s32 %v115, %v112
    %v130 = vadd.s32 %v115, %v113
    %v131 = vadd.s32 %v115, %v114
    %v132 = vstv %s87
    %vm133 = vcmp.lt.s32.totalorder %v116, %v132
    %vm134 = vcmp.lt.s32.totalorder %v117, %v132
    %vm135 = vcmp.lt.s32.totalorder %v118, %v132
    %vm136 = vcmp.lt.s32.totalorder %v119, %v132
    %vm137 = vcmp.lt.s32.totalorder %v120, %v132
    %vm138 = vcmp.lt.s32.totalorder %v121, %v132
    %vm139 = vcmp.lt.s32.totalorder %v122, %v132
    %vm140 = vcmp.lt.s32.totalorder %v123, %v132
    %vm141 = vcmp.lt.s32.totalorder %v124, %v132
    %vm142 = vcmp.lt.s32.totalorder %v125, %v132
    %vm143 = vcmp.lt.s32.totalorder %v126, %v132
    %vm144 = vcmp.lt.s32.totalorder %v127, %v132
    %vm145 = vcmp.lt.s32.totalorder %v128, %v132
    %vm146 = vcmp.lt.s32.totalorder %v129, %v132
    %vm147 = vcmp.lt.s32.totalorder %v130, %v132
    %vm148 = vcmp.lt.s32.totalorder %v131, %v132
    %v149 = vsub.s32 %v116, %v132
    %v150 = vsub.s32 %v117, %v132
    %v151 = vsub.s32 %v118, %v132
    %v152 = vsub.s32 %v119, %v132
    %v153 = vsub.s32 %v120, %v132
    %v154 = vsub.s32 %v121, %v132
    %v155 = vsub.s32 %v122, %v132
    %v156 = vsub.s32 %v123, %v132
    %v157 = vsub.s32 %v124, %v132
    %v158 = vsub.s32 %v125, %v132
    %v159 = vsub.s32 %v126, %v132
    %v160 = vsub.s32 %v127, %v132
    %v161 = vsub.s32 %v128, %v132
    %v162 = vsub.s32 %v129, %v132
    %v163 = vsub.s32 %v130, %v132
    %v164 = vsub.s32 %v131, %v132
    %v165 = vsel %vm133, %v116, %v149
    %v166 = vsel %vm134, %v117, %v150
    %v167 = vsel %vm135, %v118, %v151
    %v168 = vsel %vm136, %v119, %v152
    %v169 = vsel %vm137, %v120, %v153
    %v170 = vsel %vm138, %v121, %v154
    %v171 = vsel %vm139, %v122, %v155
    %v172 = vsel %vm140, %v123, %v156
    %v173 = vsel %vm141, %v124, %v157
    %v174 = vsel %vm142, %v125, %v158
    %v175 = vsel %vm143, %v126, %v159
    %v176 = vsel %vm144, %v127, %v160
    %v177 = vsel %vm145, %v128, %v161
    %v178 = vsel %vm146, %v129, %v162
    %v179 = vsel %vm147, %v130, %v163
    %v180 = vsel %vm148, %v131, %v164
    %v181 = vcvt.s32.f32 %v165
    %v182 = vcvt.s32.f32 %v166
    %v183 = vcvt.s32.f32 %v167
    %v184 = vcvt.s32.f32 %v168
    %v185 = vcvt.s32.f32 %v169
    %v186 = vcvt.s32.f32 %v170
    %v187 = vcvt.s32.f32 %v171
    %v188 = vcvt.s32.f32 %v172
    %v189 = vcvt.s32.f32 %v173
    %v190 = vcvt.s32.f32 %v174
    %v191 = vcvt.s32.f32 %v175
    %v192 = vcvt.s32.f32 %v176
    %v193 = vcvt.s32.f32 %v177
    %v194 = vcvt.s32.f32 %v178
    %v195 = vcvt.s32.f32 %v179
    %v196 = vcvt.s32.f32 %v180
    %s197 = ssub.s32 16, %s86
    %v198 = vstv %s86
    %v199 = vstv %s197
    %v200 = vsel %vm133, %v198, %v199
    %v201 = vsel %vm134, %v198, %v199
    %v202 = vsel %vm135, %v198, %v199
    %v203 = vsel %vm136, %v198, %v199
    %v204 = vsel %vm137, %v198, %v199
    %v205 = vsel %vm138, %v198, %v199
    %v206 = vsel %vm139, %v198, %v199
    %v207 = vsel %vm140, %v198, %v199
    %v208 = vsel %vm141, %v198, %v199
    %v209 = vsel %vm142, %v198, %v199
    %v210 = vsel %vm143, %v198, %v199
    %v211 = vsel %vm144, %v198, %v199
    %v212 = vsel %vm145, %v198, %v199
    %v213 = vsel %vm146, %v198, %v199
    %v214 = vsel %vm147, %v198, %v199
    %v215 = vsel %vm148, %v198, %v199
    %s216 = ssub.s32 16, %s87
    %v217 = vstv %s216
    %v218 = vsel %vm133, %v132, %v217
    %v219 = vsel %vm134, %v132, %v217
    %v220 = vsel %vm135, %v132, %v217
    %v221 = vsel %vm136, %v132, %v217
    %v222 = vsel %vm137, %v132, %v217
    %v223 = vsel %vm138, %v132, %v217
    %v224 = vsel %vm139, %v132, %v217
    %v225 = vsel %vm140, %v132, %v217
    %v226 = vsel %vm141, %v132, %v217
    %v227 = vsel %vm142, %v132, %v217
    %v228 = vsel %vm143, %v132, %v217
    %v229 = vsel %vm144, %v132, %v217
    %v230 = vsel %vm145, %v132, %v217
    %v231 = vsel %vm146, %v132, %v217
    %v232 = vsel %vm147, %v132, %v217
    %v233 = vsel %vm148, %v132, %v217
    %v234 = vsel %vm133, 0, %v198
    %v235 = vsel %vm134, 0, %v198
    %v236 = vsel %vm135, 0, %v198
    %v237 = vsel %vm136, 0, %v198
    %v238 = vsel %vm137, 0, %v198
    %v239 = vsel %vm138, 0, %v198
    %v240 = vsel %vm139, 0, %v198
    %v241 = vsel %vm140, 0, %v198
    %v242 = vsel %vm141, 0, %v198
    %v243 = vsel %vm142, 0, %v198
    %v244 = vsel %vm143, 0, %v198
    %v245 = vsel %vm144, 0, %v198
    %v246 = vsel %vm145, 0, %v198
    %v247 = vsel %vm146, 0, %v198
    %v248 = vsel %vm147, 0, %v198
    %v249 = vsel %vm148, 0, %v198
    %v250 = vcvt.s32.f32 %v200
    %v251 = vcvt.s32.f32 %v201
    %v252 = vcvt.s32.f32 %v202
    %v253 = vcvt.s32.f32 %v203
    %v254 = vcvt.s32.f32 %v204
    %v255 = vcvt.s32.f32 %v205
    %v256 = vcvt.s32.f32 %v206
    %v257 = vcvt.s32.f32 %v207
    %v258 = vcvt.s32.f32 %v208
    %v259 = vcvt.s32.f32 %v209
    %v260 = vcvt.s32.f32 %v210
    %v261 = vcvt.s32.f32 %v211
    %v262 = vcvt.s32.f32 %v212
    %v263 = vcvt.s32.f32 %v213
    %v264 = vcvt.s32.f32 %v214
    %v265 = vcvt.s32.f32 %v215
    %v266 = vcvt.s32.f32 %v218
    %v267 = vcvt.s32.f32 %v219
    %v268 = vcvt.s32.f32 %v220
    %v269 = vcvt.s32.f32 %v221
    %v270 = vcvt.s32.f32 %v222
    %v271 = vcvt.s32.f32 %v223
    %v272 = vcvt.s32.f32 %v224
    %v273 = vcvt.s32.f32 %v225
    %v274 = vcvt.s32.f32 %v226
    %v275 = vcvt.s32.f32 %v227
    %v276 = vcvt.s32.f32 %v228
    %v277 = vcvt.s32.f32 %v229
    %v278 = vcvt.s32.f32 %v230
    %v279 = vcvt.s32.f32 %v231
    %v280 = vcvt.s32.f32 %v232
    %v281 = vcvt.s32.f32 %v233
    %v282 = vrcp.pop %v266
    %v283 = vmul.f32 %v250, %v282
    %v284 = vrcp.pop %v267
    %v285 = vmul.f32 %v251, %v284
    %v286 = vrcp.pop %v268
    %v287 = vmul.f32 %v252, %v286
    %v288 = vrcp.pop %v269
    %v289 = vmul.f32 %v253, %v288
    %v290 = vrcp.pop %v270
    %v291 = vmul.f32 %v254, %v290
    %v292 = vrcp.pop %v271
    %v293 = vmul.f32 %v255, %v292
    %v294 = vrcp.pop %v272
    %v295 = vmul.f32 %v256, %v294
    %v296 = vrcp.pop %v273
    %v297 = vmul.f32 %v257, %v296
    %v298 = vrcp.pop %v274
    %v299 = vmul.f32 %v258, %v298
    %v300 = vrcp.pop %v275
    %v301 = vmul.f32 %v259, %v300
    %v302 = vrcp.pop %v276
    %v303 = vmul.f32 %v260, %v302
    %v304 = vrcp.pop %v277
    %v305 = vmul.f32 %v261, %v304
    %v306 = vrcp.pop %v278
    %v307 = vmul.f32 %v262, %v306
    %v308 = vrcp.pop %v279
    %v309 = vmul.f32 %v263, %v308
    %v310 = vrcp.pop %v280
    %v311 = vmul.f32 %v264, %v310
    %v312 = vrcp.pop %v281
    %v313 = vmul.f32 %v265, %v312
    %v314 = vadd.f32 %v181, 0.5
    %v315 = vadd.f32 %v182, 0.5
    %v316 = vadd.f32 %v183, 0.5
    %v317 = vadd.f32 %v184, 0.5
    %v318 = vadd.f32 %v185, 0.5
    %v319 = vadd.f32 %v186, 0.5
    %v320 = vadd.f32 %v187, 0.5
    %v321 = vadd.f32 %v188, 0.5
    %v322 = vadd.f32 %v189, 0.5
    %v323 = vadd.f32 %v190, 0.5
    %v324 = vadd.f32 %v191, 0.5
    %v325 = vadd.f32 %v192, 0.5
    %v326 = vadd.f32 %v193, 0.5
    %v327 = vadd.f32 %v194, 0.5
    %v328 = vadd.f32 %v195, 0.5
    %v329 = vadd.f32 %v196, 0.5
    %v330 = vmul.f32 %v283, %v314
    %v331 = vmul.f32 %v285, %v315
    %v332 = vmul.f32 %v287, %v316
    %v333 = vmul.f32 %v289, %v317
    %v334 = vmul.f32 %v291, %v318
    %v335 = vmul.f32 %v293, %v319
    %v336 = vmul.f32 %v295, %v320
    %v337 = vmul.f32 %v297, %v321
    %v338 = vmul.f32 %v299, %v322
    %v339 = vmul.f32 %v301, %v323
    %v340 = vmul.f32 %v303, %v324
    %v341 = vmul.f32 %v305, %v325
    %v342 = vmul.f32 %v307, %v326
    %v343 = vmul.f32 %v309, %v327
    %v344 = vmul.f32 %v311, %v328
    %v345 = vmul.f32 %v313, %v329
    %v346 = vsub.f32 %v330, 0.5
    %v347 = vsub.f32 %v331, 0.5
    %v348 = vsub.f32 %v332, 0.5
    %v349 = vsub.f32 %v333, 0.5
    %v350 = vsub.f32 %v334, 0.5
    %v351 = vsub.f32 %v335, 0.5
    %v352 = vsub.f32 %v336, 0.5
    %v353 = vsub.f32 %v337, 0.5
    %v354 = vsub.f32 %v338, 0.5
    %v355 = vsub.f32 %v339, 0.5
    %v356 = vsub.f32 %v340, 0.5
    %v357 = vsub.f32 %v341, 0.5
    %v358 = vsub.f32 %v342, 0.5
    %v359 = vsub.f32 %v343, 0.5
    %v360 = vsub.f32 %v344, 0.5
    %v361 = vsub.f32 %v345, 0.5
    %v362 = vfloor.f32 %v346
    %v363 = vfloor.f32 %v347
    %v364 = vfloor.f32 %v348
    %v365 = vfloor.f32 %v349
    %v366 = vfloor.f32 %v350
    %v367 = vfloor.f32 %v351
    %v368 = vfloor.f32 %v352
    %v369 = vfloor.f32 %v353
    %v370 = vfloor.f32 %v354
    %v371 = vfloor.f32 %v355
    %v372 = vfloor.f32 %v356
    %v373 = vfloor.f32 %v357
    %v374 = vfloor.f32 %v358
    %v375 = vfloor.f32 %v359
    %v376 = vfloor.f32 %v360
    %v377 = vfloor.f32 %v361
    %v378 = vsub.f32 %v346, %v362
    %v379 = vsub.f32 %v347, %v363
    %v380 = vsub.f32 %v348, %v364
    %v381 = vsub.f32 %v349, %v365
    %v382 = vsub.f32 %v350, %v366
    %v383 = vsub.f32 %v351, %v367
    %v384 = vsub.f32 %v352, %v368
    %v385 = vsub.f32 %v353, %v369
    %v386 = vsub.f32 %v354, %v370
    %v387 = vsub.f32 %v355, %v371
    %v388 = vsub.f32 %v356, %v372
    %v389 = vsub.f32 %v357, %v373
    %v390 = vsub.f32 %v358, %v374
    %v391 = vsub.f32 %v359, %v375
    %v392 = vsub.f32 %v360, %v376
    %v393 = vsub.f32 %v361, %v377
    %v394 = vcvt.f32.s32.to.zero.pseudo %v362
    %v395 = vcvt.f32.s32.to.zero.pseudo %v363
    %v396 = vcvt.f32.s32.to.zero.pseudo %v364
    %v397 = vcvt.f32.s32.to.zero.pseudo %v365
    %v398 = vcvt.f32.s32.to.zero.pseudo %v366
    %v399 = vcvt.f32.s32.to.zero.pseudo %v367
    %v400 = vcvt.f32.s32.to.zero.pseudo %v368
    %v401 = vcvt.f32.s32.to.zero.pseudo %v369
    %v402 = vcvt.f32.s32.to.zero.pseudo %v370
    %v403 = vcvt.f32.s32.to.zero.pseudo %v371
    %v404 = vcvt.f32.s32.to.zero.pseudo %v372
    %v405 = vcvt.f32.s32.to.zero.pseudo %v373
    %v406 = vcvt.f32.s32.to.zero.pseudo %v374
    %v407 = vcvt.f32.s32.to.zero.pseudo %v375
    %v408 = vcvt.f32.s32.to.zero.pseudo %v376
    %v409 = vcvt.f32.s32.to.zero.pseudo %v377
    %v410 = vadd.f32 %v378, 1.0
    %v411 = vadd.f32 %v379, 1.0
    %v412 = vadd.f32 %v380, 1.0
    %v413 = vadd.f32 %v381, 1.0
    %v414 = vadd.f32 %v382, 1.0
    %v415 = vadd.f32 %v383, 1.0
    %v416 = vadd.f32 %v384, 1.0
    %v417 = vadd.f32 %v385, 1.0
    %v418 = vadd.f32 %v386, 1.0
    %v419 = vadd.f32 %v387, 1.0
    %v420 = vadd.f32 %v388, 1.0
    %v421 = vadd.f32 %v389, 1.0
    %v422 = vadd.f32 %v390, 1.0
    %v423 = vadd.f32 %v391, 1.0
    %v424 = vadd.f32 %v392, 1.0
    %v425 = vadd.f32 %v393, 1.0
    %v426 = vmul.f32 %v410, -0.75
    %v427 = vmul.f32 %v411, -0.75
    %v428 = vmul.f32 %v412, -0.75
    %v429 = vmul.f32 %v413, -0.75
    %v430 = vmul.f32 %v414, -0.75
    %v431 = vmul.f32 %v415, -0.75
    %v432 = vmul.f32 %v416, -0.75
    %v433 = vmul.f32 %v417, -0.75
    %v434 = vmul.f32 %v418, -0.75
    %v435 = vmul.f32 %v419, -0.75
    %v436 = vmul.f32 %v420, -0.75
    %v437 = vmul.f32 %v421, -0.75
    %v438 = vmul.f32 %v422, -0.75
    %v439 = vmul.f32 %v423, -0.75
    %v440 = vmul.f32 %v424, -0.75
    %v441 = vmul.f32 %v425, -0.75
    %v442 = vsub.f32 %v426, -3.75
    %v443 = vsub.f32 %v427, -3.75
    %v444 = vsub.f32 %v428, -3.75
    %v445 = vsub.f32 %v429, -3.75
    %v446 = vsub.f32 %v430, -3.75
    %v447 = vsub.f32 %v431, -3.75
    %v448 = vsub.f32 %v432, -3.75
    %v449 = vsub.f32 %v433, -3.75
    %v450 = vsub.f32 %v434, -3.75
    %v451 = vsub.f32 %v435, -3.75
    %v452 = vsub.f32 %v436, -3.75
    %v453 = vsub.f32 %v437, -3.75
    %v454 = vsub.f32 %v438, -3.75
    %v455 = vsub.f32 %v439, -3.75
    %v456 = vsub.f32 %v440, -3.75
    %v457 = vsub.f32 %v441, -3.75
    %v458 = vmul.f32 %v442, %v410
    %v459 = vmul.f32 %v443, %v411
    %v460 = vmul.f32 %v444, %v412
    %v461 = vmul.f32 %v445, %v413
    %v462 = vmul.f32 %v446, %v414
    %v463 = vmul.f32 %v447, %v415
    %v464 = vmul.f32 %v448, %v416
    %v465 = vmul.f32 %v449, %v417
    %v466 = vmul.f32 %v450, %v418
    %v467 = vmul.f32 %v451, %v419
    %v468 = vmul.f32 %v452, %v420
    %v469 = vmul.f32 %v453, %v421
    %v470 = vmul.f32 %v454, %v422
    %v471 = vmul.f32 %v455, %v423
    %v472 = vmul.f32 %v456, %v424
    %v473 = vmul.f32 %v457, %v425
    %v474 = vadd.f32 %v458, -6.0
    %v475 = vadd.f32 %v459, -6.0
    %v476 = vadd.f32 %v460, -6.0
    %v477 = vadd.f32 %v461, -6.0
    %v478 = vadd.f32 %v462, -6.0
    %v479 = vadd.f32 %v463, -6.0
    %v480 = vadd.f32 %v464, -6.0
    %v481 = vadd.f32 %v465, -6.0
    %v482 = vadd.f32 %v466, -6.0
    %v483 = vadd.f32 %v467, -6.0
    %v484 = vadd.f32 %v468, -6.0
    %v485 = vadd.f32 %v469, -6.0
    %v486 = vadd.f32 %v470, -6.0
    %v487 = vadd.f32 %v471, -6.0
    %v488 = vadd.f32 %v472, -6.0
    %v489 = vadd.f32 %v473, -6.0
    %v490 = vmul.f32 %v474, %v410
    %v491 = vmul.f32 %v475, %v411
    %v492 = vmul.f32 %v476, %v412
    %v493 = vmul.f32 %v477, %v413
    %v494 = vmul.f32 %v478, %v414
    %v495 = vmul.f32 %v479, %v415
    %v496 = vmul.f32 %v480, %v416
    %v497 = vmul.f32 %v481, %v417
    %v498 = vmul.f32 %v482, %v418
    %v499 = vmul.f32 %v483, %v419
    %v500 = vmul.f32 %v484, %v420
    %v501 = vmul.f32 %v485, %v421
    %v502 = vmul.f32 %v486, %v422
    %v503 = vmul.f32 %v487, %v423
    %v504 = vmul.f32 %v488, %v424
    %v505 = vmul.f32 %v489, %v425
    %v506 = vsub.f32 %v490, -3.0
    %v507 = vsub.f32 %v491, -3.0
    %v508 = vsub.f32 %v492, -3.0
    %v509 = vsub.f32 %v493, -3.0
    %v510 = vsub.f32 %v494, -3.0
    %v511 = vsub.f32 %v495, -3.0
    %v512 = vsub.f32 %v496, -3.0
    %v513 = vsub.f32 %v497, -3.0
    %v514 = vsub.f32 %v498, -3.0
    %v515 = vsub.f32 %v499, -3.0
    %v516 = vsub.f32 %v500, -3.0
    %v517 = vsub.f32 %v501, -3.0
    %v518 = vsub.f32 %v502, -3.0
    %v519 = vsub.f32 %v503, -3.0
    %v520 = vsub.f32 %v504, -3.0
    %v521 = vsub.f32 %v505, -3.0
    %v522 = vmul.f32 %v378, 1.25
    %v523 = vmul.f32 %v379, 1.25
    %v524 = vmul.f32 %v380, 1.25
    %v525 = vmul.f32 %v381, 1.25
    %v526 = vmul.f32 %v382, 1.25
    %v527 = vmul.f32 %v383, 1.25
    %v528 = vmul.f32 %v384, 1.25
    %v529 = vmul.f32 %v385, 1.25
    %v530 = vmul.f32 %v386, 1.25
    %v531 = vmul.f32 %v387, 1.25
    %v532 = vmul.f32 %v388, 1.25
    %v533 = vmul.f32 %v389, 1.25
    %v534 = vmul.f32 %v390, 1.25
    %v535 = vmul.f32 %v391, 1.25
    %v536 = vmul.f32 %v392, 1.25
    %v537 = vmul.f32 %v393, 1.25
    %v538 = vsub.f32 %v522, 2.25
    %v539 = vsub.f32 %v523, 2.25
    %v540 = vsub.f32 %v524, 2.25
    %v541 = vsub.f32 %v525, 2.25
    %v542 = vsub.f32 %v526, 2.25
    %v543 = vsub.f32 %v527, 2.25
    %v544 = vsub.f32 %v528, 2.25
    %v545 = vsub.f32 %v529, 2.25
    %v546 = vsub.f32 %v530, 2.25
    %v547 = vsub.f32 %v531, 2.25
    %v548 = vsub.f32 %v532, 2.25
    %v549 = vsub.f32 %v533, 2.25
    %v550 = vsub.f32 %v534, 2.25
    %v551 = vsub.f32 %v535, 2.25
    %v552 = vsub.f32 %v536, 2.25
    %v553 = vsub.f32 %v537, 2.25
    %v554 = vmul.f32 %v538, %v378
    %v555 = vmul.f32 %v539, %v379
    %v556 = vmul.f32 %v540, %v380
    %v557 = vmul.f32 %v541, %v381
    %v558 = vmul.f32 %v542, %v382
    %v559 = vmul.f32 %v543, %v383
    %v560 = vmul.f32 %v544, %v384
    %v561 = vmul.f32 %v545, %v385
    %v562 = vmul.f32 %v546, %v386
    %v563 = vmul.f32 %v547, %v387
    %v564 = vmul.f32 %v548, %v388
    %v565 = vmul.f32 %v549, %v389
    %v566 = vmul.f32 %v550, %v390
    %v567 = vmul.f32 %v551, %v391
    %v568 = vmul.f32 %v552, %v392
    %v569 = vmul.f32 %v553, %v393
    %v570 = vmul.f32 %v554, %v378
    %v571 = vmul.f32 %v555, %v379
    %v572 = vmul.f32 %v556, %v380
    %v573 = vmul.f32 %v557, %v381
    %v574 = vmul.f32 %v558, %v382
    %v575 = vmul.f32 %v559, %v383
    %v576 = vmul.f32 %v560, %v384
    %v577 = vmul.f32 %v561, %v385
    %v578 = vmul.f32 %v562, %v386
    %v579 = vmul.f32 %v563, %v387
    %v580 = vmul.f32 %v564, %v388
    %v581 = vmul.f32 %v565, %v389
    %v582 = vmul.f32 %v566, %v390
    %v583 = vmul.f32 %v567, %v391
    %v584 = vmul.f32 %v568, %v392
    %v585 = vmul.f32 %v569, %v393
    %v586 = vadd.f32 %v570, 1.0
    %v587 = vadd.f32 %v571, 1.0
    %v588 = vadd.f32 %v572, 1.0
    %v589 = vadd.f32 %v573, 1.0
    %v590 = vadd.f32 %v574, 1.0
    %v591 = vadd.f32 %v575, 1.0
    %v592 = vadd.f32 %v576, 1.0
    %v593 = vadd.f32 %v577, 1.0
    %v594 = vadd.f32 %v578, 1.0
    %v595 = vadd.f32 %v579, 1.0
    %v596 = vadd.f32 %v580, 1.0
    %v597 = vadd.f32 %v581, 1.0
    %v598 = vadd.f32 %v582, 1.0
    %v599 = vadd.f32 %v583, 1.0
    %v600 = vadd.f32 %v584, 1.0
    %v601 = vadd.f32 %v585, 1.0
    %v602 = vsub.f32 1.0, %v378
    %v603 = vsub.f32 1.0, %v379
    %v604 = vsub.f32 1.0, %v380
    %v605 = vsub.f32 1.0, %v381
    %v606 = vsub.f32 1.0, %v382
    %v607 = vsub.f32 1.0, %v383
    %v608 = vsub.f32 1.0, %v384
    %v609 = vsub.f32 1.0, %v385
    %v610 = vsub.f32 1.0, %v386
    %v611 = vsub.f32 1.0, %v387
    %v612 = vsub.f32 1.0, %v388
    %v613 = vsub.f32 1.0, %v389
    %v614 = vsub.f32 1.0, %v390
    %v615 = vsub.f32 1.0, %v391
    %v616 = vsub.f32 1.0, %v392
    %v617 = vsub.f32 1.0, %v393
    %v618 = vmul.f32 %v602, 1.25
    %v619 = vmul.f32 %v603, 1.25
    %v620 = vmul.f32 %v604, 1.25
    %v621 = vmul.f32 %v605, 1.25
    %v622 = vmul.f32 %v606, 1.25
    %v623 = vmul.f32 %v607, 1.25
    %v624 = vmul.f32 %v608, 1.25
    %v625 = vmul.f32 %v609, 1.25
    %v626 = vmul.f32 %v610, 1.25
    %v627 = vmul.f32 %v611, 1.25
    %v628 = vmul.f32 %v612, 1.25
    %v629 = vmul.f32 %v613, 1.25
    %v630 = vmul.f32 %v614, 1.25
    %v631 = vmul.f32 %v615, 1.25
    %v632 = vmul.f32 %v616, 1.25
    %v633 = vmul.f32 %v617, 1.25
    %v634 = vsub.f32 %v618, 2.25
    %v635 = vsub.f32 %v619, 2.25
    %v636 = vsub.f32 %v620, 2.25
    %v637 = vsub.f32 %v621, 2.25
    %v638 = vsub.f32 %v622, 2.25
    %v639 = vsub.f32 %v623, 2.25
    %v640 = vsub.f32 %v624, 2.25
    %v641 = vsub.f32 %v625, 2.25
    %v642 = vsub.f32 %v626, 2.25
    %v643 = vsub.f32 %v627, 2.25
    %v644 = vsub.f32 %v628, 2.25
    %v645 = vsub.f32 %v629, 2.25
    %v646 = vsub.f32 %v630, 2.25
    %v647 = vsub.f32 %v631, 2.25
    %v648 = vsub.f32 %v632, 2.25
    %v649 = vsub.f32 %v633, 2.25
    %v650 = vmul.f32 %v634, %v602
    %v651 = vmul.f32 %v635, %v603
    %v652 = vmul.f32 %v636, %v604
    %v653 = vmul.f32 %v637, %v605
    %v654 = vmul.f32 %v638, %v606
    %v655 = vmul.f32 %v639, %v607
    %v656 = vmul.f32 %v640, %v608
    %v657 = vmul.f32 %v641, %v609
    %v658 = vmul.f32 %v642, %v610
    %v659 = vmul.f32 %v643, %v611
    %v660 = vmul.f32 %v644, %v612
    %v661 = vmul.f32 %v645, %v613
    %v662 = vmul.f32 %v646, %v614
    %v663 = vmul.f32 %v647, %v615
    %v664 = vmul.f32 %v648, %v616
    %v665 = vmul.f32 %v649, %v617
    %v666 = vmul.f32 %v650, %v602
    %v667 = vmul.f32 %v651, %v603
    %v668 = vmul.f32 %v652, %v604
    %v669 = vmul.f32 %v653, %v605
    %v670 = vmul.f32 %v654, %v606
    %v671 = vmul.f32 %v655, %v607
    %v672 = vmul.f32 %v656, %v608
    %v673 = vmul.f32 %v657, %v609
    %v674 = vmul.f32 %v658, %v610
    %v675 = vmul.f32 %v659, %v611
    %v676 = vmul.f32 %v660, %v612
    %v677 = vmul.f32 %v661, %v613
    %v678 = vmul.f32 %v662, %v614
    %v679 = vmul.f32 %v663, %v615
    %v680 = vmul.f32 %v664, %v616
    %v681 = vmul.f32 %v665, %v617
    %v682 = vadd.f32 %v666, 1.0
    %v683 = vadd.f32 %v667, 1.0
    %v684 = vadd.f32 %v668, 1.0
    %v685 = vadd.f32 %v669, 1.0
    %v686 = vadd.f32 %v670, 1.0
    %v687 = vadd.f32 %v671, 1.0
    %v688 = vadd.f32 %v672, 1.0
    %v689 = vadd.f32 %v673, 1.0
    %v690 = vadd.f32 %v674, 1.0
    %v691 = vadd.f32 %v675, 1.0
    %v692 = vadd.f32 %v676, 1.0
    %v693 = vadd.f32 %v677, 1.0
    %v694 = vadd.f32 %v678, 1.0
    %v695 = vadd.f32 %v679, 1.0
    %v696 = vadd.f32 %v680, 1.0
    %v697 = vadd.f32 %v681, 1.0
    %v698 = vsub.f32 2.0, %v378
    %v699 = vsub.f32 2.0, %v379
    %v700 = vsub.f32 2.0, %v380
    %v701 = vsub.f32 2.0, %v381
    %v702 = vsub.f32 2.0, %v382
    %v703 = vsub.f32 2.0, %v383
    %v704 = vsub.f32 2.0, %v384
    %v705 = vsub.f32 2.0, %v385
    %v706 = vsub.f32 2.0, %v386
    %v707 = vsub.f32 2.0, %v387
    %v708 = vsub.f32 2.0, %v388
    %v709 = vsub.f32 2.0, %v389
    %v710 = vsub.f32 2.0, %v390
    %v711 = vsub.f32 2.0, %v391
    %v712 = vsub.f32 2.0, %v392
    %v713 = vsub.f32 2.0, %v393
    %v714 = vmul.f32 %v698, -0.75
    %v715 = vmul.f32 %v699, -0.75
    %v716 = vmul.f32 %v700, -0.75
    %v717 = vmul.f32 %v701, -0.75
    %v718 = vmul.f32 %v702, -0.75
    %v719 = vmul.f32 %v703, -0.75
    %v720 = vmul.f32 %v704, -0.75
    %v721 = vmul.f32 %v705, -0.75
    %v722 = vmul.f32 %v706, -0.75
    %v723 = vmul.f32 %v707, -0.75
    %v724 = vmul.f32 %v708, -0.75
    %v725 = vmul.f32 %v709, -0.75
    %v726 = vmul.f32 %v710, -0.75
    %v727 = vmul.f32 %v711, -0.75
    %v728 = vmul.f32 %v712, -0.75
    %v729 = vmul.f32 %v713, -0.75
    %v730 = vsub.f32 %v714, -3.75
    %v731 = vsub.f32 %v715, -3.75
    %v732 = vsub.f32 %v716, -3.75
    %v733 = vsub.f32 %v717, -3.75
    %v734 = vsub.f32 %v718, -3.75
    %v735 = vsub.f32 %v719, -3.75
    %v736 = vsub.f32 %v720, -3.75
    %v737 = vsub.f32 %v721, -3.75
    %v738 = vsub.f32 %v722, -3.75
    %v739 = vsub.f32 %v723, -3.75
    %v740 = vsub.f32 %v724, -3.75
    %v741 = vsub.f32 %v725, -3.75
    %v742 = vsub.f32 %v726, -3.75
    %v743 = vsub.f32 %v727, -3.75
    %v744 = vsub.f32 %v728, -3.75
    %v745 = vsub.f32 %v729, -3.75
    %v746 = vmul.f32 %v730, %v698
    %v747 = vmul.f32 %v731, %v699
    %v748 = vmul.f32 %v732, %v700
    %v749 = vmul.f32 %v733, %v701
    %v750 = vmul.f32 %v734, %v702
    %v751 = vmul.f32 %v735, %v703
    %v752 = vmul.f32 %v736, %v704
    %v753 = vmul.f32 %v737, %v705
    %v754 = vmul.f32 %v738, %v706
    %v755 = vmul.f32 %v739, %v707
    %v756 = vmul.f32 %v740, %v708
    %v757 = vmul.f32 %v741, %v709
    %v758 = vmul.f32 %v742, %v710
    %v759 = vmul.f32 %v743, %v711
    %v760 = vmul.f32 %v744, %v712
    %v761 = vmul.f32 %v745, %v713
    %v762 = vadd.f32 %v746, -6.0
    %v763 = vadd.f32 %v747, -6.0
    %v764 = vadd.f32 %v748, -6.0
    %v765 = vadd.f32 %v749, -6.0
    %v766 = vadd.f32 %v750, -6.0
    %v767 = vadd.f32 %v751, -6.0
    %v768 = vadd.f32 %v752, -6.0
    %v769 = vadd.f32 %v753, -6.0
    %v770 = vadd.f32 %v754, -6.0
    %v771 = vadd.f32 %v755, -6.0
    %v772 = vadd.f32 %v756, -6.0
    %v773 = vadd.f32 %v757, -6.0
    %v774 = vadd.f32 %v758, -6.0
    %v775 = vadd.f32 %v759, -6.0
    %v776 = vadd.f32 %v760, -6.0
    %v777 = vadd.f32 %v761, -6.0
    %v778 = vmul.f32 %v762, %v698
    %v779 = vmul.f32 %v763, %v699
    %v780 = vmul.f32 %v764, %v700
    %v781 = vmul.f32 %v765, %v701
    %v782 = vmul.f32 %v766, %v702
    %v783 = vmul.f32 %v767, %v703
    %v784 = vmul.f32 %v768, %v704
    %v785 = vmul.f32 %v769, %v705
    %v786 = vmul.f32 %v770, %v706
    %v787 = vmul.f32 %v771, %v707
    %v788 = vmul.f32 %v772, %v708
    %v789 = vmul.f32 %v773, %v709
    %v790 = vmul.f32 %v774, %v710
    %v791 = vmul.f32 %v775, %v711
    %v792 = vmul.f32 %v776, %v712
    %v793 = vmul.f32 %v777, %v713
    %v794 = vsub.f32 %v778, -3.0
    %v795 = vsub.f32 %v779, -3.0
    %v796 = vsub.f32 %v780, -3.0
    %v797 = vsub.f32 %v781, -3.0
    %v798 = vsub.f32 %v782, -3.0
    %v799 = vsub.f32 %v783, -3.0
    %v800 = vsub.f32 %v784, -3.0
    %v801 = vsub.f32 %v785, -3.0
    %v802 = vsub.f32 %v786, -3.0
    %v803 = vsub.f32 %v787, -3.0
    %v804 = vsub.f32 %v788, -3.0
    %v805 = vsub.f32 %v789, -3.0
    %v806 = vsub.f32 %v790, -3.0
    %v807 = vsub.f32 %v791, -3.0
    %v808 = vsub.f32 %v792, -3.0
    %v809 = vsub.f32 %v793, -3.0
    %v810 = vlaneseq
    %v811 = vand.u32 %v810, 127
    %v812 = vstv %s97
    %v813 = vadd.s32 %v812, %v811
    %v814 = vsub.s32 %v200, 1
    %v815 = vsub.s32 %v201, 1
    %v816 = vsub.s32 %v202, 1
    %v817 = vsub.s32 %v203, 1
    %v818 = vsub.s32 %v204, 1
    %v819 = vsub.s32 %v205, 1
    %v820 = vsub.s32 %v206, 1
    %v821 = vsub.s32 %v207, 1
    %v822 = vsub.s32 %v208, 1
    %v823 = vsub.s32 %v209, 1
    %v824 = vsub.s32 %v210, 1
    %v825 = vsub.s32 %v211, 1
    %v826 = vsub.s32 %v212, 1
    %v827 = vsub.s32 %v213, 1
    %v828 = vsub.s32 %v214, 1
    %v829 = vsub.s32 %v215, 1
    %v830 = vsub.s32 %v394, 1
    %v831 = vsub.s32 %v395, 1
    %v832 = vsub.s32 %v396, 1
    %v833 = vsub.s32 %v397, 1
    %v834 = vsub.s32 %v398, 1
    %v835 = vsub.s32 %v399, 1
    %v836 = vsub.s32 %v400, 1
    %v837 = vsub.s32 %v401, 1
    %v838 = vsub.s32 %v402, 1
    %v839 = vsub.s32 %v403, 1
    %v840 = vsub.s32 %v404, 1
    %v841 = vsub.s32 %v405, 1
    %v842 = vsub.s32 %v406, 1
    %v843 = vsub.s32 %v407, 1
    %v844 = vsub.s32 %v408, 1
    %v845 = vsub.s32 %v409, 1
    %vm846 = vcmp.gt.s32.totalorder %v830, 0
    %v847 = vsel %vm846, %v830, 0
    %vm848 = vcmp.gt.s32.totalorder %v831, 0
    %v849 = vsel %vm848, %v831, 0
    %vm850 = vcmp.gt.s32.totalorder %v832, 0
    %v851 = vsel %vm850, %v832, 0
    %vm852 = vcmp.gt.s32.totalorder %v833, 0
    %v853 = vsel %vm852, %v833, 0
    %vm854 = vcmp.gt.s32.totalorder %v834, 0
    %v855 = vsel %vm854, %v834, 0
    %vm856 = vcmp.gt.s32.totalorder %v835, 0
    %v857 = vsel %vm856, %v835, 0
    %vm858 = vcmp.gt.s32.totalorder %v836, 0
    %v859 = vsel %vm858, %v836, 0
    %vm860 = vcmp.gt.s32.totalorder %v837, 0
    %v861 = vsel %vm860, %v837, 0
    %vm862 = vcmp.gt.s32.totalorder %v838, 0
    %v863 = vsel %vm862, %v838, 0
    %vm864 = vcmp.gt.s32.totalorder %v839, 0
    %v865 = vsel %vm864, %v839, 0
    %vm866 = vcmp.gt.s32.totalorder %v840, 0
    %v867 = vsel %vm866, %v840, 0
    %vm868 = vcmp.gt.s32.totalorder %v841, 0
    %v869 = vsel %vm868, %v841, 0
    %vm870 = vcmp.gt.s32.totalorder %v842, 0
    %v871 = vsel %vm870, %v842, 0
    %vm872 = vcmp.gt.s32.totalorder %v843, 0
    %v873 = vsel %vm872, %v843, 0
    %vm874 = vcmp.gt.s32.totalorder %v844, 0
    %v875 = vsel %vm874, %v844, 0
    %vm876 = vcmp.gt.s32.totalorder %v845, 0
    %v877 = vsel %vm876, %v845, 0
    %vm878 = vcmp.lt.s32.totalorder %v814, %v847
    %v879 = vsel %vm878, %v814, %v847
    %vm880 = vcmp.lt.s32.totalorder %v815, %v849
    %v881 = vsel %vm880, %v815, %v849
    %vm882 = vcmp.lt.s32.totalorder %v816, %v851
    %v883 = vsel %vm882, %v816, %v851
    %vm884 = vcmp.lt.s32.totalorder %v817, %v853
    %v885 = vsel %vm884, %v817, %v853
    %vm886 = vcmp.lt.s32.totalorder %v818, %v855
    %v887 = vsel %vm886, %v818, %v855
    %vm888 = vcmp.lt.s32.totalorder %v819, %v857
    %v889 = vsel %vm888, %v819, %v857
    %vm890 = vcmp.lt.s32.totalorder %v820, %v859
    %v891 = vsel %vm890, %v820, %v859
    %vm892 = vcmp.lt.s32.totalorder %v821, %v861
    %v893 = vsel %vm892, %v821, %v861
    %vm894 = vcmp.lt.s32.totalorder %v822, %v863
    %v895 = vsel %vm894, %v822, %v863
    %vm896 = vcmp.lt.s32.totalorder %v823, %v865
    %v897 = vsel %vm896, %v823, %v865
    %vm898 = vcmp.lt.s32.totalorder %v824, %v867
    %v899 = vsel %vm898, %v824, %v867
    %vm900 = vcmp.lt.s32.totalorder %v825, %v869
    %v901 = vsel %vm900, %v825, %v869
    %vm902 = vcmp.lt.s32.totalorder %v826, %v871
    %v903 = vsel %vm902, %v826, %v871
    %vm904 = vcmp.lt.s32.totalorder %v827, %v873
    %v905 = vsel %vm904, %v827, %v873
    %vm906 = vcmp.lt.s32.totalorder %v828, %v875
    %v907 = vsel %vm906, %v828, %v875
    %vm908 = vcmp.lt.s32.totalorder %v829, %v877
    %v909 = vsel %vm908, %v829, %v877
    %v910 = vadd.s32 %v879, %v234
    %v911 = vadd.s32 %v881, %v235
    %v912 = vadd.s32 %v883, %v236
    %v913 = vadd.s32 %v885, %v237
    %v914 = vadd.s32 %v887, %v238
    %v915 = vadd.s32 %v889, %v239
    %v916 = vadd.s32 %v891, %v240
    %v917 = vadd.s32 %v893, %v241
    %v918 = vadd.s32 %v895, %v242
    %v919 = vadd.s32 %v897, %v243
    %v920 = vadd.s32 %v899, %v244
    %v921 = vadd.s32 %v901, %v245
    %v922 = vadd.s32 %v903, %v246
    %v923 = vadd.s32 %v905, %v247
    %v924 = vadd.s32 %v907, %v248
    %v925 = vadd.s32 %v909, %v249
    %vm926 = vcmp.eq.s32.totalorder %v813, %v910
    %vm927 = vcmp.eq.s32.totalorder %v813, %v911
    %vm928 = vcmp.eq.s32.totalorder %v813, %v912
    %vm929 = vcmp.eq.s32.totalorder %v813, %v913
    %vm930 = vcmp.eq.s32.totalorder %v813, %v914
    %vm931 = vcmp.eq.s32.totalorder %v813, %v915
    %vm932 = vcmp.eq.s32.totalorder %v813, %v916
    %vm933 = vcmp.eq.s32.totalorder %v813, %v917
    %vm934 = vcmp.eq.s32.totalorder %v813, %v918
    %vm935 = vcmp.eq.s32.totalorder %v813, %v919
    %vm936 = vcmp.eq.s32.totalorder %v813, %v920
    %vm937 = vcmp.eq.s32.totalorder %v813, %v921
    %vm938 = vcmp.eq.s32.totalorder %v813, %v922
    %vm939 = vcmp.eq.s32.totalorder %v813, %v923
    %vm940 = vcmp.eq.s32.totalorder %v813, %v924
    %vm941 = vcmp.eq.s32.totalorder %v813, %v925
    %v942 = vsel %vm926, %v506, 0.0
    %v943 = vsel %vm927, %v507, 0.0
    %v944 = vsel %vm928, %v508, 0.0
    %v945 = vsel %vm929, %v509, 0.0
    %v946 = vsel %vm930, %v510, 0.0
    %v947 = vsel %vm931, %v511, 0.0
    %v948 = vsel %vm932, %v512, 0.0
    %v949 = vsel %vm933, %v513, 0.0
    %v950 = vsel %vm934, %v514, 0.0
    %v951 = vsel %vm935, %v515, 0.0
    %v952 = vsel %vm936, %v516, 0.0
    %v953 = vsel %vm937, %v517, 0.0
    %v954 = vsel %vm938, %v518, 0.0
    %v955 = vsel %vm939, %v519, 0.0
    %v956 = vsel %vm940, %v520, 0.0
    %v957 = vsel %vm941, %v521, 0.0
    %v958 = vadd.f32 %v942, 0.0
    %v959 = vadd.f32 %v943, 0.0
    %v960 = vadd.f32 %v944, 0.0
    %v961 = vadd.f32 %v945, 0.0
    %v962 = vadd.f32 %v946, 0.0
    %v963 = vadd.f32 %v947, 0.0
    %v964 = vadd.f32 %v948, 0.0
    %v965 = vadd.f32 %v949, 0.0
    %v966 = vadd.f32 %v950, 0.0
    %v967 = vadd.f32 %v951, 0.0
    %v968 = vadd.f32 %v952, 0.0
    %v969 = vadd.f32 %v953, 0.0
    %v970 = vadd.f32 %v954, 0.0
    %v971 = vadd.f32 %v955, 0.0
    %v972 = vadd.f32 %v956, 0.0
    %v973 = vadd.f32 %v957, 0.0
    %vm974 = vcmp.gt.s32.totalorder %v394, 0
    %v975 = vsel %vm974, %v394, 0
    %vm976 = vcmp.gt.s32.totalorder %v395, 0
    %v977 = vsel %vm976, %v395, 0
    %vm978 = vcmp.gt.s32.totalorder %v396, 0
    %v979 = vsel %vm978, %v396, 0
    %vm980 = vcmp.gt.s32.totalorder %v397, 0
    %v981 = vsel %vm980, %v397, 0
    %vm982 = vcmp.gt.s32.totalorder %v398, 0
    %v983 = vsel %vm982, %v398, 0
    %vm984 = vcmp.gt.s32.totalorder %v399, 0
    %v985 = vsel %vm984, %v399, 0
    %vm986 = vcmp.gt.s32.totalorder %v400, 0
    %v987 = vsel %vm986, %v400, 0
    %vm988 = vcmp.gt.s32.totalorder %v401, 0
    %v989 = vsel %vm988, %v401, 0
    %vm990 = vcmp.gt.s32.totalorder %v402, 0
    %v991 = vsel %vm990, %v402, 0
    %vm992 = vcmp.gt.s32.totalorder %v403, 0
    %v993 = vsel %vm992, %v403, 0
    %vm994 = vcmp.gt.s32.totalorder %v404, 0
    %v995 = vsel %vm994, %v404, 0
    %vm996 = vcmp.gt.s32.totalorder %v405, 0
    %v997 = vsel %vm996, %v405, 0
    %vm998 = vcmp.gt.s32.totalorder %v406, 0
    %v999 = vsel %vm998, %v406, 0
    %vm1000 = vcmp.gt.s32.totalorder %v407, 0
    %v1001 = vsel %vm1000, %v407, 0
    %vm1002 = vcmp.gt.s32.totalorder %v408, 0
    %v1003 = vsel %vm1002, %v408, 0
    %vm1004 = vcmp.gt.s32.totalorder %v409, 0
    %v1005 = vsel %vm1004, %v409, 0
    %vm1006 = vcmp.lt.s32.totalorder %v814, %v975
    %v1007 = vsel %vm1006, %v814, %v975
    %vm1008 = vcmp.lt.s32.totalorder %v815, %v977
    %v1009 = vsel %vm1008, %v815, %v977
    %vm1010 = vcmp.lt.s32.totalorder %v816, %v979
    %v1011 = vsel %vm1010, %v816, %v979
    %vm1012 = vcmp.lt.s32.totalorder %v817, %v981
    %v1013 = vsel %vm1012, %v817, %v981
    %vm1014 = vcmp.lt.s32.totalorder %v818, %v983
    %v1015 = vsel %vm1014, %v818, %v983
    %vm1016 = vcmp.lt.s32.totalorder %v819, %v985
    %v1017 = vsel %vm1016, %v819, %v985
    %vm1018 = vcmp.lt.s32.totalorder %v820, %v987
    %v1019 = vsel %vm1018, %v820, %v987
    %vm1020 = vcmp.lt.s32.totalorder %v821, %v989
    %v1021 = vsel %vm1020, %v821, %v989
    %vm1022 = vcmp.lt.s32.totalorder %v822, %v991
    %v1023 = vsel %vm1022, %v822, %v991
    %vm1024 = vcmp.lt.s32.totalorder %v823, %v993
    %v1025 = vsel %vm1024, %v823, %v993
    %vm1026 = vcmp.lt.s32.totalorder %v824, %v995
    %v1027 = vsel %vm1026, %v824, %v995
    %vm1028 = vcmp.lt.s32.totalorder %v825, %v997
    %v1029 = vsel %vm1028, %v825, %v997
    %vm1030 = vcmp.lt.s32.totalorder %v826, %v999
    %v1031 = vsel %vm1030, %v826, %v999
    %vm1032 = vcmp.lt.s32.totalorder %v827, %v1001
    %v1033 = vsel %vm1032, %v827, %v1001
    %vm1034 = vcmp.lt.s32.totalorder %v828, %v1003
    %v1035 = vsel %vm1034, %v828, %v1003
    %vm1036 = vcmp.lt.s32.totalorder %v829, %v1005
    %v1037 = vsel %vm1036, %v829, %v1005
    %v1038 = vadd.s32 %v1007, %v234
    %v1039 = vadd.s32 %v1009, %v235
    %v1040 = vadd.s32 %v1011, %v236
    %v1041 = vadd.s32 %v1013, %v237
    %v1042 = vadd.s32 %v1015, %v238
    %v1043 = vadd.s32 %v1017, %v239
    %v1044 = vadd.s32 %v1019, %v240
    %v1045 = vadd.s32 %v1021, %v241
    %v1046 = vadd.s32 %v1023, %v242
    %v1047 = vadd.s32 %v1025, %v243
    %v1048 = vadd.s32 %v1027, %v244
    %v1049 = vadd.s32 %v1029, %v245
    %v1050 = vadd.s32 %v1031, %v246
    %v1051 = vadd.s32 %v1033, %v247
    %v1052 = vadd.s32 %v1035, %v248
    %v1053 = vadd.s32 %v1037, %v249
    %vm1054 = vcmp.eq.s32.totalorder %v813, %v1038
    %vm1055 = vcmp.eq.s32.totalorder %v813, %v1039
    %vm1056 = vcmp.eq.s32.totalorder %v813, %v1040
    %vm1057 = vcmp.eq.s32.totalorder %v813, %v1041
    %vm1058 = vcmp.eq.s32.totalorder %v813, %v1042
    %vm1059 = vcmp.eq.s32.totalorder %v813, %v1043
    %vm1060 = vcmp.eq.s32.totalorder %v813, %v1044
    %vm1061 = vcmp.eq.s32.totalorder %v813, %v1045
    %vm1062 = vcmp.eq.s32.totalorder %v813, %v1046
    %vm1063 = vcmp.eq.s32.totalorder %v813, %v1047
    %vm1064 = vcmp.eq.s32.totalorder %v813, %v1048
    %vm1065 = vcmp.eq.s32.totalorder %v813, %v1049
    %vm1066 = vcmp.eq.s32.totalorder %v813, %v1050
    %vm1067 = vcmp.eq.s32.totalorder %v813, %v1051
    %vm1068 = vcmp.eq.s32.totalorder %v813, %v1052
    %vm1069 = vcmp.eq.s32.totalorder %v813, %v1053
    %v1070 = vsel %vm1054, %v586, 0.0
    %v1071 = vsel %vm1055, %v587, 0.0
    %v1072 = vsel %vm1056, %v588, 0.0
    %v1073 = vsel %vm1057, %v589, 0.0
    %v1074 = vsel %vm1058, %v590, 0.0
    %v1075 = vsel %vm1059, %v591, 0.0
    %v1076 = vsel %vm1060, %v592, 0.0
    %v1077 = vsel %vm1061, %v593, 0.0
    %v1078 = vsel %vm1062, %v594, 0.0
    %v1079 = vsel %vm1063, %v595, 0.0
    %v1080 = vsel %vm1064, %v596, 0.0
    %v1081 = vsel %vm1065, %v597, 0.0
    %v1082 = vsel %vm1066, %v598, 0.0
    %v1083 = vsel %vm1067, %v599, 0.0
    %v1084 = vsel %vm1068, %v600, 0.0
    %v1085 = vsel %vm1069, %v601, 0.0
    %v1086 = vadd.f32 %v958, %v1070
    %v1087 = vadd.f32 %v959, %v1071
    %v1088 = vadd.f32 %v960, %v1072
    %v1089 = vadd.f32 %v961, %v1073
    %v1090 = vadd.f32 %v962, %v1074
    %v1091 = vadd.f32 %v963, %v1075
    %v1092 = vadd.f32 %v964, %v1076
    %v1093 = vadd.f32 %v965, %v1077
    %v1094 = vadd.f32 %v966, %v1078
    %v1095 = vadd.f32 %v967, %v1079
    %v1096 = vadd.f32 %v968, %v1080
    %v1097 = vadd.f32 %v969, %v1081
    %v1098 = vadd.f32 %v970, %v1082
    %v1099 = vadd.f32 %v971, %v1083
    %v1100 = vadd.f32 %v972, %v1084
    %v1101 = vadd.f32 %v973, %v1085
    %v1102 = vadd.s32 %v830, 2
    %v1103 = vadd.s32 %v831, 2
    %v1104 = vadd.s32 %v832, 2
    %v1105 = vadd.s32 %v833, 2
    %v1106 = vadd.s32 %v834, 2
    %v1107 = vadd.s32 %v835, 2
    %v1108 = vadd.s32 %v836, 2
    %v1109 = vadd.s32 %v837, 2
    %v1110 = vadd.s32 %v838, 2
    %v1111 = vadd.s32 %v839, 2
    %v1112 = vadd.s32 %v840, 2
    %v1113 = vadd.s32 %v841, 2
    %v1114 = vadd.s32 %v842, 2
    %v1115 = vadd.s32 %v843, 2
    %v1116 = vadd.s32 %v844, 2
    %v1117 = vadd.s32 %v845, 2
    %vm1118 = vcmp.gt.s32.totalorder %v1102, 0
    %v1119 = vsel %vm1118, %v1102, 0
    %vm1120 = vcmp.gt.s32.totalorder %v1103, 0
    %v1121 = vsel %vm1120, %v1103, 0
    %vm1122 = vcmp.gt.s32.totalorder %v1104, 0
    %v1123 = vsel %vm1122, %v1104, 0
    %vm1124 = vcmp.gt.s32.totalorder %v1105, 0
    %v1125 = vsel %vm1124, %v1105, 0
    %vm1126 = vcmp.gt.s32.totalorder %v1106, 0
    %v1127 = vsel %vm1126, %v1106, 0
    %vm1128 = vcmp.gt.s32.totalorder %v1107, 0
    %v1129 = vsel %vm1128, %v1107, 0
    %vm1130 = vcmp.gt.s32.totalorder %v1108, 0
    %v1131 = vsel %vm1130, %v1108, 0
    %vm1132 = vcmp.gt.s32.totalorder %v1109, 0
    %v1133 = vsel %vm1132, %v1109, 0
    %vm1134 = vcmp.gt.s32.totalorder %v1110, 0
    %v1135 = vsel %vm1134, %v1110, 0
    %vm1136 = vcmp.gt.s32.totalorder %v1111, 0
    %v1137 = vsel %vm1136, %v1111, 0
    %vm1138 = vcmp.gt.s32.totalorder %v1112, 0
    %v1139 = vsel %vm1138, %v1112, 0
    %vm1140 = vcmp.gt.s32.totalorder %v1113, 0
    %v1141 = vsel %vm1140, %v1113, 0
    %vm1142 = vcmp.gt.s32.totalorder %v1114, 0
    %v1143 = vsel %vm1142, %v1114, 0
    %vm1144 = vcmp.gt.s32.totalorder %v1115, 0
    %v1145 = vsel %vm1144, %v1115, 0
    %vm1146 = vcmp.gt.s32.totalorder %v1116, 0
    %v1147 = vsel %vm1146, %v1116, 0
    %vm1148 = vcmp.gt.s32.totalorder %v1117, 0
    %v1149 = vsel %vm1148, %v1117, 0
    %vm1150 = vcmp.lt.s32.totalorder %v814, %v1119
    %v1151 = vsel %vm1150, %v814, %v1119
    %vm1152 = vcmp.lt.s32.totalorder %v815, %v1121
    %v1153 = vsel %vm1152, %v815, %v1121
    %vm1154 = vcmp.lt.s32.totalorder %v816, %v1123
    %v1155 = vsel %vm1154, %v816, %v1123
    %vm1156 = vcmp.lt.s32.totalorder %v817, %v1125
    %v1157 = vsel %vm1156, %v817, %v1125
    %vm1158 = vcmp.lt.s32.totalorder %v818, %v1127
    %v1159 = vsel %vm1158, %v818, %v1127
    %vm1160 = vcmp.lt.s32.totalorder %v819, %v1129
    %v1161 = vsel %vm1160, %v819, %v1129
    %vm1162 = vcmp.lt.s32.totalorder %v820, %v1131
    %v1163 = vsel %vm1162, %v820, %v1131
    %vm1164 = vcmp.lt.s32.totalorder %v821, %v1133
    %v1165 = vsel %vm1164, %v821, %v1133
    %vm1166 = vcmp.lt.s32.totalorder %v822, %v1135
    %v1167 = vsel %vm1166, %v822, %v1135
    %vm1168 = vcmp.lt.s32.totalorder %v823, %v1137
    %v1169 = vsel %vm1168, %v823, %v1137
    %vm1170 = vcmp.lt.s32.totalorder %v824, %v1139
    %v1171 = vsel %vm1170, %v824, %v1139
    %vm1172 = vcmp.lt.s32.totalorder %v825, %v1141
    %v1173 = vsel %vm1172, %v825, %v1141
    %vm1174 = vcmp.lt.s32.totalorder %v826, %v1143
    %v1175 = vsel %vm1174, %v826, %v1143
    %vm1176 = vcmp.lt.s32.totalorder %v827, %v1145
    %v1177 = vsel %vm1176, %v827, %v1145
    %vm1178 = vcmp.lt.s32.totalorder %v828, %v1147
    %v1179 = vsel %vm1178, %v828, %v1147
    %vm1180 = vcmp.lt.s32.totalorder %v829, %v1149
    %v1181 = vsel %vm1180, %v829, %v1149
    %v1182 = vadd.s32 %v1151, %v234
    %v1183 = vadd.s32 %v1153, %v235
    %v1184 = vadd.s32 %v1155, %v236
    %v1185 = vadd.s32 %v1157, %v237
    %v1186 = vadd.s32 %v1159, %v238
    %v1187 = vadd.s32 %v1161, %v239
    %v1188 = vadd.s32 %v1163, %v240
    %v1189 = vadd.s32 %v1165, %v241
    %v1190 = vadd.s32 %v1167, %v242
    %v1191 = vadd.s32 %v1169, %v243
    %v1192 = vadd.s32 %v1171, %v244
    %v1193 = vadd.s32 %v1173, %v245
    %v1194 = vadd.s32 %v1175, %v246
    %v1195 = vadd.s32 %v1177, %v247
    %v1196 = vadd.s32 %v1179, %v248
    %v1197 = vadd.s32 %v1181, %v249
    %vm1198 = vcmp.eq.s32.totalorder %v813, %v1182
    %vm1199 = vcmp.eq.s32.totalorder %v813, %v1183
    %vm1200 = vcmp.eq.s32.totalorder %v813, %v1184
    %vm1201 = vcmp.eq.s32.totalorder %v813, %v1185
    %vm1202 = vcmp.eq.s32.totalorder %v813, %v1186
    %vm1203 = vcmp.eq.s32.totalorder %v813, %v1187
    %vm1204 = vcmp.eq.s32.totalorder %v813, %v1188
    %vm1205 = vcmp.eq.s32.totalorder %v813, %v1189
    %vm1206 = vcmp.eq.s32.totalorder %v813, %v1190
    %vm1207 = vcmp.eq.s32.totalorder %v813, %v1191
    %vm1208 = vcmp.eq.s32.totalorder %v813, %v1192
    %vm1209 = vcmp.eq.s32.totalorder %v813, %v1193
    %vm1210 = vcmp.eq.s32.totalorder %v813, %v1194
    %vm1211 = vcmp.eq.s32.totalorder %v813, %v1195
    %vm1212 = vcmp.eq.s32.totalorder %v813, %v1196
    %vm1213 = vcmp.eq.s32.totalorder %v813, %v1197
    %v1214 = vsel %vm1198, %v682, 0.0
    %v1215 = vsel %vm1199, %v683, 0.0
    %v1216 = vsel %vm1200, %v684, 0.0
    %v1217 = vsel %vm1201, %v685, 0.0
    %v1218 = vsel %vm1202, %v686, 0.0
    %v1219 = vsel %vm1203, %v687, 0.0
    %v1220 = vsel %vm1204, %v688, 0.0
    %v1221 = vsel %vm1205, %v689, 0.0
    %v1222 = vsel %vm1206, %v690, 0.0
    %v1223 = vsel %vm1207, %v691, 0.0
    %v1224 = vsel %vm1208, %v692, 0.0
    %v1225 = vsel %vm1209, %v693, 0.0
    %v1226 = vsel %vm1210, %v694, 0.0
    %v1227 = vsel %vm1211, %v695, 0.0
    %v1228 = vsel %vm1212, %v696, 0.0
    %v1229 = vsel %vm1213, %v697, 0.0
    %v1230 = vadd.f32 %v1086, %v1214
    %v1231 = vadd.f32 %v1087, %v1215
    %v1232 = vadd.f32 %v1088, %v1216
    %v1233 = vadd.f32 %v1089, %v1217
    %v1234 = vadd.f32 %v1090, %v1218
    %v1235 = vadd.f32 %v1091, %v1219
    %v1236 = vadd.f32 %v1092, %v1220
    %v1237 = vadd.f32 %v1093, %v1221
    %v1238 = vadd.f32 %v1094, %v1222
    %v1239 = vadd.f32 %v1095, %v1223
    %v1240 = vadd.f32 %v1096, %v1224
    %v1241 = vadd.f32 %v1097, %v1225
    %v1242 = vadd.f32 %v1098, %v1226
    %v1243 = vadd.f32 %v1099, %v1227
    %v1244 = vadd.f32 %v1100, %v1228
    %v1245 = vadd.f32 %v1101, %v1229
    %v1246 = vadd.s32 %v830, 3
    %v1247 = vadd.s32 %v831, 3
    %v1248 = vadd.s32 %v832, 3
    %v1249 = vadd.s32 %v833, 3
    %v1250 = vadd.s32 %v834, 3
    %v1251 = vadd.s32 %v835, 3
    %v1252 = vadd.s32 %v836, 3
    %v1253 = vadd.s32 %v837, 3
    %v1254 = vadd.s32 %v838, 3
    %v1255 = vadd.s32 %v839, 3
    %v1256 = vadd.s32 %v840, 3
    %v1257 = vadd.s32 %v841, 3
    %v1258 = vadd.s32 %v842, 3
    %v1259 = vadd.s32 %v843, 3
    %v1260 = vadd.s32 %v844, 3
    %v1261 = vadd.s32 %v845, 3
    %vm1262 = vcmp.gt.s32.totalorder %v1246, 0
    %v1263 = vsel %vm1262, %v1246, 0
    %vm1264 = vcmp.gt.s32.totalorder %v1247, 0
    %v1265 = vsel %vm1264, %v1247, 0
    %vm1266 = vcmp.gt.s32.totalorder %v1248, 0
    %v1267 = vsel %vm1266, %v1248, 0
    %vm1268 = vcmp.gt.s32.totalorder %v1249, 0
    %v1269 = vsel %vm1268, %v1249, 0
    %vm1270 = vcmp.gt.s32.totalorder %v1250, 0
    %v1271 = vsel %vm1270, %v1250, 0
    %vm1272 = vcmp.gt.s32.totalorder %v1251, 0
    %v1273 = vsel %vm1272, %v1251, 0
    %vm1274 = vcmp.gt.s32.totalorder %v1252, 0
    %v1275 = vsel %vm1274, %v1252, 0
    %vm1276 = vcmp.gt.s32.totalorder %v1253, 0
    %v1277 = vsel %vm1276, %v1253, 0
    %vm1278 = vcmp.gt.s32.totalorder %v1254, 0
    %v1279 = vsel %vm1278, %v1254, 0
    %vm1280 = vcmp.gt.s32.totalorder %v1255, 0
    %v1281 = vsel %vm1280, %v1255, 0
    %vm1282 = vcmp.gt.s32.totalorder %v1256, 0
    %v1283 = vsel %vm1282, %v1256, 0
    %vm1284 = vcmp.gt.s32.totalorder %v1257, 0
    %v1285 = vsel %vm1284, %v1257, 0
    %vm1286 = vcmp.gt.s32.totalorder %v1258, 0
    %v1287 = vsel %vm1286, %v1258, 0
    %vm1288 = vcmp.gt.s32.totalorder %v1259, 0
    %v1289 = vsel %vm1288, %v1259, 0
    %vm1290 = vcmp.gt.s32.totalorder %v1260, 0
    %v1291 = vsel %vm1290, %v1260, 0
    %vm1292 = vcmp.gt.s32.totalorder %v1261, 0
    %v1293 = vsel %vm1292, %v1261, 0
    %vm1294 = vcmp.lt.s32.totalorder %v814, %v1263
    %v1295 = vsel %vm1294, %v814, %v1263
    %vm1296 = vcmp.lt.s32.totalorder %v815, %v1265
    %v1297 = vsel %vm1296, %v815, %v1265
    %vm1298 = vcmp.lt.s32.totalorder %v816, %v1267
    %v1299 = vsel %vm1298, %v816, %v1267
    %vm1300 = vcmp.lt.s32.totalorder %v817, %v1269
    %v1301 = vsel %vm1300, %v817, %v1269
    %vm1302 = vcmp.lt.s32.totalorder %v818, %v1271
    %v1303 = vsel %vm1302, %v818, %v1271
    %vm1304 = vcmp.lt.s32.totalorder %v819, %v1273
    %v1305 = vsel %vm1304, %v819, %v1273
    %vm1306 = vcmp.lt.s32.totalorder %v820, %v1275
    %v1307 = vsel %vm1306, %v820, %v1275
    %vm1308 = vcmp.lt.s32.totalorder %v821, %v1277
    %v1309 = vsel %vm1308, %v821, %v1277
    %vm1310 = vcmp.lt.s32.totalorder %v822, %v1279
    %v1311 = vsel %vm1310, %v822, %v1279
    %vm1312 = vcmp.lt.s32.totalorder %v823, %v1281
    %v1313 = vsel %vm1312, %v823, %v1281
    %vm1314 = vcmp.lt.s32.totalorder %v824, %v1283
    %v1315 = vsel %vm1314, %v824, %v1283
    %vm1316 = vcmp.lt.s32.totalorder %v825, %v1285
    %v1317 = vsel %vm1316, %v825, %v1285
    %vm1318 = vcmp.lt.s32.totalorder %v826, %v1287
    %v1319 = vsel %vm1318, %v826, %v1287
    %vm1320 = vcmp.lt.s32.totalorder %v827, %v1289
    %v1321 = vsel %vm1320, %v827, %v1289
    %vm1322 = vcmp.lt.s32.totalorder %v828, %v1291
    %v1323 = vsel %vm1322, %v828, %v1291
    %vm1324 = vcmp.lt.s32.totalorder %v829, %v1293
    %v1325 = vsel %vm1324, %v829, %v1293
    %v1326 = vadd.s32 %v1295, %v234
    %v1327 = vadd.s32 %v1297, %v235
    %v1328 = vadd.s32 %v1299, %v236
    %v1329 = vadd.s32 %v1301, %v237
    %v1330 = vadd.s32 %v1303, %v238
    %v1331 = vadd.s32 %v1305, %v239
    %v1332 = vadd.s32 %v1307, %v240
    %v1333 = vadd.s32 %v1309, %v241
    %v1334 = vadd.s32 %v1311, %v242
    %v1335 = vadd.s32 %v1313, %v243
    %v1336 = vadd.s32 %v1315, %v244
    %v1337 = vadd.s32 %v1317, %v245
    %v1338 = vadd.s32 %v1319, %v246
    %v1339 = vadd.s32 %v1321, %v247
    %v1340 = vadd.s32 %v1323, %v248
    %v1341 = vadd.s32 %v1325, %v249
    %vm1342 = vcmp.eq.s32.totalorder %v813, %v1326
    %vm1343 = vcmp.eq.s32.totalorder %v813, %v1327
    %vm1344 = vcmp.eq.s32.totalorder %v813, %v1328
    %vm1345 = vcmp.eq.s32.totalorder %v813, %v1329
    %vm1346 = vcmp.eq.s32.totalorder %v813, %v1330
    %vm1347 = vcmp.eq.s32.totalorder %v813, %v1331
    %vm1348 = vcmp.eq.s32.totalorder %v813, %v1332
    %vm1349 = vcmp.eq.s32.totalorder %v813, %v1333
    %vm1350 = vcmp.eq.s32.totalorder %v813, %v1334
    %vm1351 = vcmp.eq.s32.totalorder %v813, %v1335
    %vm1352 = vcmp.eq.s32.totalorder %v813, %v1336
    %vm1353 = vcmp.eq.s32.totalorder %v813, %v1337
    %vm1354 = vcmp.eq.s32.totalorder %v813, %v1338
    %vm1355 = vcmp.eq.s32.totalorder %v813, %v1339
    %vm1356 = vcmp.eq.s32.totalorder %v813, %v1340
    %vm1357 = vcmp.eq.s32.totalorder %v813, %v1341
    %v1358 = vsel %vm1342, %v794, 0.0
    %v1359 = vsel %vm1343, %v795, 0.0
    %v1360 = vsel %vm1344, %v796, 0.0
    %v1361 = vsel %vm1345, %v797, 0.0
    %v1362 = vsel %vm1346, %v798, 0.0
    %v1363 = vsel %vm1347, %v799, 0.0
    %v1364 = vsel %vm1348, %v800, 0.0
    %v1365 = vsel %vm1349, %v801, 0.0
    %v1366 = vsel %vm1350, %v802, 0.0
    %v1367 = vsel %vm1351, %v803, 0.0
    %v1368 = vsel %vm1352, %v804, 0.0
    %v1369 = vsel %vm1353, %v805, 0.0
    %v1370 = vsel %vm1354, %v806, 0.0
    %v1371 = vsel %vm1355, %v807, 0.0
    %v1372 = vsel %vm1356, %v808, 0.0
    %v1373 = vsel %vm1357, %v809, 0.0
    %v1374 = vadd.f32 %v1230, %v1358
    %v1375 = vadd.f32 %v1231, %v1359
    %v1376 = vadd.f32 %v1232, %v1360
    %v1377 = vadd.f32 %v1233, %v1361
    %v1378 = vadd.f32 %v1234, %v1362
    %v1379 = vadd.f32 %v1235, %v1363
    %v1380 = vadd.f32 %v1236, %v1364
    %v1381 = vadd.f32 %v1237, %v1365
    %v1382 = vadd.f32 %v1238, %v1366
    %v1383 = vadd.f32 %v1239, %v1367
    %v1384 = vadd.f32 %v1240, %v1368
    %v1385 = vadd.f32 %v1241, %v1369
    %v1386 = vadd.f32 %v1242, %v1370
    %v1387 = vadd.f32 %v1243, %v1371
    %v1388 = vadd.f32 %v1244, %v1372
    %v1389 = vadd.f32 %v1245, %v1373
    %v1390 = vld [vmem:[#allocation2] sm:$0xff]
    %v1391 = vld [vmem:[#allocation2 + $0x8] sm:$0xff]
    %v1392 = vld [vmem:[#allocation2 + $0x10] sm:$0xff]
    %v1393 = vld [vmem:[#allocation2 + $0x18] sm:$0xff]
    %v1394 = vld [vmem:[#allocation2 + $0x20] sm:$0xff]
    %v1395 = vld [vmem:[#allocation2 + $0x28] sm:$0xff]
    %v1396 = vld [vmem:[#allocation2 + $0x30] sm:$0xff]
    %v1397 = vld [vmem:[#allocation2 + $0x38] sm:$0xff]
    %v1398 = vld [vmem:[#allocation2 + $0x40] sm:$0xff]
    %v1399 = vld [vmem:[#allocation2 + $0x48] sm:$0xff]
    %v1400 = vld [vmem:[#allocation2 + $0x50] sm:$0xff]
    %v1401 = vld [vmem:[#allocation2 + $0x58] sm:$0xff]
    %v1402 = vld [vmem:[#allocation2 + $0x60] sm:$0xff]
    %v1403 = vld [vmem:[#allocation2 + $0x68] sm:$0xff]
    %v1404 = vld [vmem:[#allocation2 + $0x70] sm:$0xff]
    %v1405 = vld [vmem:[#allocation2 + $0x78] sm:$0xff]
    %v1406 = vld [vmem:[%s58] sm:$0xff]
    %v1407 = vld [vmem:[%s58 + $0x8] sm:$0xff]
    %v1408 = vld [vmem:[%s58 + $0x10] sm:$0xff]
    %v1409 = vld [vmem:[%s58 + $0x18] sm:$0xff]
    %v1410 = vld [vmem:[%s58 + $0x20] sm:$0xff]
    %v1411 = vld [vmem:[%s58 + $0x28] sm:$0xff]
    %v1412 = vld [vmem:[%s58 + $0x30] sm:$0xff]
    %v1413 = vld [vmem:[%s58 + $0x38] sm:$0xff]
    %v1414 = vld [vmem:[%s58 + $0x40] sm:$0xff]
    %v1415 = vld [vmem:[%s58 + $0x48] sm:$0xff]
    %v1416 = vld [vmem:[%s58 + $0x50] sm:$0xff]
    %v1417 = vld [vmem:[%s58 + $0x58] sm:$0xff]
    %v1418 = vld [vmem:[%s58 + $0x60] sm:$0xff]
    %v1419 = vld [vmem:[%s58 + $0x68] sm:$0xff]
    %v1420 = vld [vmem:[%s58 + $0x70] sm:$0xff]
    %v1421 = vld [vmem:[%s58 + $0x78] sm:$0xff]
    %1422 = vmatprep.subr.mxu0 0.0
    %1423 = vmatpush1.msra.mxu0 %v1421
    %1424 = vmatprep.subr.mxu0 0.0
    %1425 = vmatpush1.msra.mxu0 %v1420
    %1426 = vmatprep.subr.mxu0 0.0
    %1427 = vmatpush1.msra.mxu0 %v1419
    %1428 = vmatprep.subr.mxu0 0.0
    %1429 = vmatpush1.msra.mxu0 %v1418
    %1430 = vmatprep.subr.mxu0 0.0
    %1431 = vmatpush1.msra.mxu0 %v1417
    %1432 = vmatprep.subr.mxu0 0.0
    %1433 = vmatpush1.msra.mxu0 %v1416
    %1434 = vmatprep.subr.mxu0 0.0
    %1435 = vmatpush1.msra.mxu0 %v1415
    %1436 = vmatprep.subr.mxu0 0.0
    %1437 = vmatpush1.msra.mxu0 %v1414
    %1438 = vmatprep.subr.mxu0 0.0
    %1439 = vmatpush1.msra.mxu0 %v1413
    %1440 = vmatprep.subr.mxu0 0.0
    %1441 = vmatpush1.msra.mxu0 %v1412
    %1442 = vmatprep.subr.mxu0 0.0
    %1443 = vmatpush1.msra.mxu0 %v1411
    %1444 = vmatprep.subr.mxu0 0.0
    %1445 = vmatpush1.msra.mxu0 %v1410
    %1446 = vmatprep.subr.mxu0 0.0
    %1447 = vmatpush1.msra.mxu0 %v1409
    %1448 = vmatprep.subr.mxu0 0.0
    %1449 = vmatpush1.msra.mxu0 %v1408
    %1450 = vmatprep.subr.mxu0 0.0
    %1451 = vmatpush1.msra.mxu0 %v1407
    %1452 = vmatprep.subr.mxu0 0.0
    %1453 = vmatpush1.msra.mxu0 %v1406
    %1454 = vmatprep.subr.mxu0 0.0
    %1455 = vmatpush2.msra.mxu0 0.0
    %1456 = vmatprep.subr.mxu0 0.0
    %1457 = vmatpush2.msra.mxu0 0.0
    %1458 = vmatprep.subr.mxu0 0.0
    %1459 = vmatpush2.msra.mxu0 0.0
    %1460 = vmatprep.subr.mxu0 0.0
    %1461 = vmatpush2.msra.mxu0 0.0
    %1462 = vmatprep.subr.mxu0 0.0
    %1463 = vmatpush2.msra.mxu0 0.0
    %1464 = vmatprep.subr.mxu0 0.0
    %1465 = vmatpush2.msra.mxu0 0.0
    %1466 = vmatprep.subr.mxu0 0.0
    %1467 = vmatpush2.msra.mxu0 0.0
    %1468 = vmatprep.subr.mxu0 0.0
    %1469 = vmatpush2.msra.mxu0 0.0
    %1470 = vmatprep.subr.mxu0 0.0
    %1471 = vmatpush2.msra.mxu0 0.0
    %1472 = vmatprep.subr.mxu0 0.0
    %1473 = vmatpush2.msra.mxu0 0.0
    %1474 = vmatprep.subr.mxu0 0.0
    %1475 = vmatpush2.msra.mxu0 0.0
    %1476 = vmatprep.subr.mxu0 0.0
    %1477 = vmatpush2.msra.mxu0 0.0
    %1478 = vmatprep.subr.mxu0 0.0
    %1479 = vmatpush2.msra.mxu0 0.0
    %1480 = vmatprep.subr.mxu0 0.0
    %1481 = vmatpush2.msra.mxu0 0.0
    %1482 = vmatprep.subr.mxu0 0.0
    %1483 = vmatpush2.msra.mxu0 0.0
    %1484 = vmatprep.subr.mxu0 0.0
    %1485 = vmatpush2.msra.mxu0 0.0
    %1486 = vmatprep.mubr.f32.mxu0 0.0
    %1487 = vmatmul.mubr.f32.gmra.mxu0 %v1374
    %v1488 = vpop.f32.mrf.mxu0
    %v1489 = vadd.f32 0.0, %v1488
    %v1490 = vpop.f32.mrf.mxu0
    %1491 = vmatprep.mubr.f32.mxu0 0.0
    %1492 = vmatmul.mubr.f32.gmra.mxu0 %v1375
    %v1493 = vpop.f32.mrf.mxu0
    %v1494 = vadd.f32 0.0, %v1493
    %v1495 = vpop.f32.mrf.mxu0
    %1496 = vmatprep.mubr.f32.mxu0 0.0
    %1497 = vmatmul.mubr.f32.gmra.mxu0 %v1376
    %v1498 = vpop.f32.mrf.mxu0
    %v1499 = vadd.f32 0.0, %v1498
    %v1500 = vpop.f32.mrf.mxu0
    %1501 = vmatprep.mubr.f32.mxu0 0.0
    %1502 = vmatmul.mubr.f32.gmra.mxu0 %v1377
    %v1503 = vpop.f32.mrf.mxu0
    %v1504 = vadd.f32 0.0, %v1503
    %v1505 = vpop.f32.mrf.mxu0
    %1506 = vmatprep.mubr.f32.mxu0 0.0
    %1507 = vmatmul.mubr.f32.gmra.mxu0 %v1378
    %v1508 = vpop.f32.mrf.mxu0
    %v1509 = vadd.f32 0.0, %v1508
    %v1510 = vpop.f32.mrf.mxu0
    %1511 = vmatprep.mubr.f32.mxu0 0.0
    %1512 = vmatmul.mubr.f32.gmra.mxu0 %v1379
    %v1513 = vpop.f32.mrf.mxu0
    %v1514 = vadd.f32 0.0, %v1513
    %v1515 = vpop.f32.mrf.mxu0
    %1516 = vmatprep.mubr.f32.mxu0 0.0
    %1517 = vmatmul.mubr.f32.gmra.mxu0 %v1380
    %v1518 = vpop.f32.mrf.mxu0
    %v1519 = vadd.f32 0.0, %v1518
    %v1520 = vpop.f32.mrf.mxu0
    %1521 = vmatprep.mubr.f32.mxu0 0.0
    %1522 = vmatmul.mubr.f32.gmra.mxu0 %v1381
    %v1523 = vpop.f32.mrf.mxu0
    %v1524 = vadd.f32 0.0, %v1523
    %v1525 = vpop.f32.mrf.mxu0
    %1526 = vmatprep.mubr.f32.mxu0 0.0
    %1527 = vmatmul.mubr.f32.gmra.mxu0 %v1382
    %v1528 = vpop.f32.mrf.mxu0
    %v1529 = vadd.f32 0.0, %v1528
    %v1530 = vpop.f32.mrf.mxu0
    %1531 = vmatprep.mubr.f32.mxu0 0.0
    %1532 = vmatmul.mubr.f32.gmra.mxu0 %v1383
    %v1533 = vpop.f32.mrf.mxu0
    %v1534 = vadd.f32 0.0, %v1533
    %v1535 = vpop.f32.mrf.mxu0
    %1536 = vmatprep.mubr.f32.mxu0 0.0
    %1537 = vmatmul.mubr.f32.gmra.mxu0 %v1384
    %v1538 = vpop.f32.mrf.mxu0
    %v1539 = vadd.f32 0.0, %v1538
    %v1540 = vpop.f32.mrf.mxu0
    %1541 = vmatprep.mubr.f32.mxu0 0.0
    %1542 = vmatmul.mubr.f32.gmra.mxu0 %v1385
    %v1543 = vpop.f32.mrf.mxu0
    %v1544 = vadd.f32 0.0, %v1543
    %v1545 = vpop.f32.mrf.mxu0
    %1546 = vmatprep.mubr.f32.mxu0 0.0
    %1547 = vmatmul.mubr.f32.gmra.mxu0 %v1386
    %v1548 = vpop.f32.mrf.mxu0
    %v1549 = vadd.f32 0.0, %v1548
    %v1550 = vpop.f32.mrf.mxu0
    %1551 = vmatprep.mubr.f32.mxu0 0.0
    %1552 = vmatmul.mubr.f32.gmra.mxu0 %v1387
    %v1553 = vpop.f32.mrf.mxu0
    %v1554 = vadd.f32 0.0, %v1553
    %v1555 = vpop.f32.mrf.mxu0
    %1556 = vmatprep.mubr.f32.mxu0 0.0
    %1557 = vmatmul.mubr.f32.gmra.mxu0 %v1388
    %v1558 = vpop.f32.mrf.mxu0
    %v1559 = vadd.f32 0.0, %v1558
    %v1560 = vpop.f32.mrf.mxu0
    %1561 = vmatprep.mubr.f32.mxu0 0.0
    %1562 = vmatmul.mubr.f32.gmra.mxu0 %v1389
    %v1563 = vpop.f32.mrf.mxu0
    %v1564 = vadd.f32 0.0, %v1563
    %v1565 = vpop.f32.mrf.mxu0
    %1566 = vdwg.mxu0
    %v1567 = vadd.f32 %v1390, %v1489
    %v1568 = vadd.f32 %v1391, %v1494
    %v1569 = vadd.f32 %v1392, %v1499
    %v1570 = vadd.f32 %v1393, %v1504
    %v1571 = vadd.f32 %v1394, %v1509
    %v1572 = vadd.f32 %v1395, %v1514
    %v1573 = vadd.f32 %v1396, %v1519
    %v1574 = vadd.f32 %v1397, %v1524
    %v1575 = vadd.f32 %v1398, %v1529
    %v1576 = vadd.f32 %v1399, %v1534
    %v1577 = vadd.f32 %v1400, %v1539
    %v1578 = vadd.f32 %v1401, %v1544
    %v1579 = vadd.f32 %v1402, %v1549
    %v1580 = vadd.f32 %v1403, %v1554
    %v1581 = vadd.f32 %v1404, %v1559
    %v1582 = vadd.f32 %v1405, %v1564
    %1583 = vst [vmem:[#allocation2] sm:$0xff] %v1567
    %1584 = vst [vmem:[#allocation2 + $0x8] sm:$0xff] %v1568
    %1585 = vst [vmem:[#allocation2 + $0x10] sm:$0xff] %v1569
    %1586 = vst [vmem:[#allocation2 + $0x18] sm:$0xff] %v1570
    %1587 = vst [vmem:[#allocation2 + $0x20] sm:$0xff] %v1571
    %1588 = vst [vmem:[#allocation2 + $0x28] sm:$0xff] %v1572
    %1589 = vst [vmem:[#allocation2 + $0x30] sm:$0xff] %v1573
    %1590 = vst [vmem:[#allocation2 + $0x38] sm:$0xff] %v1574
    %1591 = vst [vmem:[#allocation2 + $0x40] sm:$0xff] %v1575
    %1592 = vst [vmem:[#allocation2 + $0x48] sm:$0xff] %v1576
    %1593 = vst [vmem:[#allocation2 + $0x50] sm:$0xff] %v1577
    %1594 = vst [vmem:[#allocation2 + $0x58] sm:$0xff] %v1578
    %1595 = vst [vmem:[#allocation2 + $0x60] sm:$0xff] %v1579
    %1596 = vst [vmem:[#allocation2 + $0x68] sm:$0xff] %v1580
    %1597 = vst [vmem:[#allocation2 + $0x70] sm:$0xff] %v1581
    %1598 = vst [vmem:[#allocation2 + $0x78] sm:$0xff] %v1582
  $region13: #{time_warp.1} parent=0 // pred_fallthru
    _
  // Predicated region
  $region14: #{time_warp.1} parent=0 // pred_check
    %p1599 = pneg %p66
  $region15: #{time_warp.1} parent=0 // pred_check_branch
    %1601 = sbr.rel (%p1599) target = $region17
  $region16: #{time_warp.1} parent=0 // pred_region
    %v1602 = vld [vmem:[#allocation2] sm:$0xff]
    %v1603 = vld [vmem:[#allocation2 + $0x8] sm:$0xff]
    %v1604 = vld [vmem:[#allocation2 + $0x10] sm:$0xff]
    %v1605 = vld [vmem:[#allocation2 + $0x18] sm:$0xff]
    %v1606 = vld [vmem:[#allocation2 + $0x20] sm:$0xff]
    %v1607 = vld [vmem:[#allocation2 + $0x28] sm:$0xff]
    %v1608 = vld [vmem:[#allocation2 + $0x30] sm:$0xff]
    %v1609 = vld [vmem:[#allocation2 + $0x38] sm:$0xff]
    %v1610 = vld [vmem:[#allocation2 + $0x40] sm:$0xff]
    %v1611 = vld [vmem:[#allocation2 + $0x48] sm:$0xff]
    %v1612 = vld [vmem:[#allocation2 + $0x50] sm:$0xff]
    %v1613 = vld [vmem:[#allocation2 + $0x58] sm:$0xff]
    %v1614 = vld [vmem:[#allocation2 + $0x60] sm:$0xff]
    %v1615 = vld [vmem:[#allocation2 + $0x68] sm:$0xff]
    %v1616 = vld [vmem:[#allocation2 + $0x70] sm:$0xff]
    %v1617 = vld [vmem:[#allocation2 + $0x78] sm:$0xff]
    %1618 = vst [vmem:[%s4] sm:$0xff] %v1602
    %1619 = vst [vmem:[%s4 + $0x8] sm:$0xff] %v1603
    %1620 = vst [vmem:[%s4 + $0x10] sm:$0xff] %v1604
    %1621 = vst [vmem:[%s4 + $0x18] sm:$0xff] %v1605
    %1622 = vst [vmem:[%s4 + $0x20] sm:$0xff] %v1606
    %1623 = vst [vmem:[%s4 + $0x28] sm:$0xff] %v1607
    %1624 = vst [vmem:[%s4 + $0x30] sm:$0xff] %v1608
    %1625 = vst [vmem:[%s4 + $0x38] sm:$0xff] %v1609
    %1626 = vst [vmem:[%s4 + $0x40] sm:$0xff] %v1610
    %1627 = vst [vmem:[%s4 + $0x48] sm:$0xff] %v1611
    %1628 = vst [vmem:[%s4 + $0x50] sm:$0xff] %v1612
    %1629 = vst [vmem:[%s4 + $0x58] sm:$0xff] %v1613
    %1630 = vst [vmem:[%s4 + $0x60] sm:$0xff] %v1614
    %1631 = vst [vmem:[%s4 + $0x68] sm:$0xff] %v1615
    %1632 = vst [vmem:[%s4 + $0x70] sm:$0xff] %v1616
    %1633 = vst [vmem:[%s4 + $0x78] sm:$0xff] %v1617
  $region17: #{time_warp.1} parent=0 // pred_fallthru
    _
  // Predicated region
  $region18: #{time_warp.1} parent=0 // pred_check
    _
  $region19: #{time_warp.1} parent=0 // pred_check_branch
    %1635 = sbr.rel (0) target = $region21
  $region20: #{time_warp.1} parent=0 // pred_region
    _
  $region21: #{time_warp.1} parent=0 // pred_fallthru
    _
  // Predicated region
  $region22: #{time_warp.1} parent=0 // pred_check
    _
  $region23: #{time_warp.1} parent=0 // pred_check_branch
    %1637 = sbr.rel (0) target = $region25
  $region24: #{time_warp.1} parent=0 // pred_region
    _
  $region25: #{time_warp.1} parent=0 // pred_fallthru
    _

</llo_original>
